<compile_context>
chip_gen: v7x
topology: tpu7x:2x2x1
jax: 0.10.0
libtpu: 0.0.40
codegen_flags: <defaults>
</compile_context>

<pallas_src>
import functools

import jax
import jax.numpy as jnp
import numpy as np
from jax.experimental import pallas as pl
from jax.experimental.pallas import tpu as pltpu


def _round_up(x, m):
    return ((x + m - 1) // m) * m


def _num_tensorcores():
    """Best-effort TensorCore-per-chip count (2 on v7x, 1 on v5e/v6e)."""
    try:
        info = pltpu.get_tpu_info()
        for attr in ("num_cores", "core_count", "num_tensorcores"):
            n = getattr(info, attr, None)
            if isinstance(n, int) and n in (1, 2):
                return n
    except Exception:
        pass
    try:
        kind = (getattr(jax.devices()[0], "device_kind", "") or "").lower()
        if "v7" in kind:
            return 2
    except Exception:
        pass
    return 1


# ----------------------------------------------------------------------------
# Kernel A: projection + fused per-metapath reduction.
#   z_ref   : (row_tile, D)   tile of flattened (rows_pad, D) z
#   w1_ref  : (D, H)
#   b1_ref  : (1, H)          f32
#   acc_ref : (M_pad, H)      resident f32 accumulator (constant index over i)
# acc[m, k] += sum over rows j of this tile with (global j % M == m, j valid)
#              of tanh(z @ W1 + b1)[j, k]
# The selector is built in-kernel from iota (no host input) and masks rows
# past the real N*M (host padding).
# ----------------------------------------------------------------------------
def _proj_partial_kernel(z_ref, w1_ref, b1_ref, acc_ref, *, M, rows_valid,
                         tiles_per_part):
    @pl.when(pl.program_id(1) == 0)
    def _():
        acc_ref[...] = jnp.zeros_like(acc_ref)

    h = jnp.tanh(
        jnp.dot(z_ref[...], w1_ref[...], preferred_element_type=jnp.float32)
        + b1_ref[...]
    )                                                    # (row_tile, H) f32

    M_pad = acc_ref.shape[0]
    row_tile = z_ref.shape[0]
    col = jax.lax.broadcasted_iota(jnp.int32, (M_pad, row_tile), 1)
    mp = jax.lax.broadcasted_iota(jnp.int32, (M_pad, row_tile), 0)
    tile = pl.program_id(0) * tiles_per_part + pl.program_id(1)
    valid = (col + tile * row_tile) < rows_valid
    sel = jnp.where((col % M == mp) & valid, 1.0, 0.0).astype(jnp.float32)
    acc_ref[...] += jnp.dot(sel, h, preferred_element_type=jnp.float32)


# ----------------------------------------------------------------------------
# Kernel B: out[n, :] = sum_m beta[m] * z[n, m, :]
#   beta_ref : (M,) f32 in SMEM (scalar reads)
#   z_ref    : (n_tile, M*D)   lane-dense 2-D view of z
#   o_ref    : (n_tile, D)     f32
# ----------------------------------------------------------------------------
def _combine_kernel(beta_ref, z_ref, o_ref, *, M, D):
    acc = beta_ref[0] * z_ref[:, 0:D].astype(jnp.float32)
    for m in range(1, M):                    # M small & static -> unrolled
        acc = acc + beta_ref[m] * z_ref[:, m * D:(m + 1) * D].astype(jnp.float32)
    o_ref[...] = acc.astype(o_ref.dtype)


def semantic_attention(z, w1, b1, w2, *, use_bf16=True, num_cores=None,
                       vmem_budget_bytes=8 * 1024 * 1024):
    """z: (N, M, D); w1: (D, H); b1: (1, H); w2: (1, H). Returns (N, D) f32."""
    N, M, D = z.shape
    Dw, H = w1.shape
    assert Dw == D and b1.shape == (1, H) and w2.shape == (1, H)

    w2 = w2.astype(jnp.float32)
    b1 = b1.astype(jnp.float32)
    compute_dtype = jnp.bfloat16 if use_bf16 else jnp.float32
    zc = z.astype(compute_dtype)
    w1c = w1.astype(compute_dtype)
    dbytes = np.dtype(compute_dtype).itemsize

    part = int(num_cores) if num_cores is not None else _num_tensorcores()
    part = max(1, min(2, part))

    # ---------------- Kernel A tiling (scale with D, conservative VMEM) -------
    rows = N * M
    unit = 8 * M                       # multiple of 8 sublanes AND of M
    per_row_a = 2 * D * dbytes + 4 * H        # double-buffered z block + f32 h
    row_tile = max(unit, (vmem_budget_bytes // max(1, per_row_a)) // unit * unit)
    row_tile = min(row_tile, _round_up(rows, unit))
    if part == 2:                      # make sure both cores get real tiles
        row_tile = min(row_tile, max(unit, _round_up(rows, 2 * unit) // 2))
    rows_pad = _round_up(rows, row_tile * part)
    num_tiles = rows_pad // row_tile
    tiles_per_part = num_tiles // part
    M_pad = max(8, _round_up(M, 8))

    z2 = zc.reshape(rows, D)                       # free view; D stays minor
    if rows_pad != rows:
        z2 = jnp.concatenate(
            [z2, jnp.zeros((rows_pad - rows, D), compute_dtype)], axis=0)

    cost_a = pl.CostEstimate(
        flops=2 * rows_pad * D * H + 2 * M_pad * rows_pad * H + rows_pad * H,
        transcendentals=rows_pad * H,
        bytes_accessed=rows_pad * D * dbytes + D * H * dbytes
        + H * 4 + part * M_pad * H * 4)

    acc = pl.pallas_call(
        functools.partial(_proj_partial_kernel, M=M, rows_valid=rows,
                          tiles_per_part=tiles_per_part),
        out_shape=jax.ShapeDtypeStruct((part, M_pad, H), jnp.float32),
        grid=(part, tiles_per_part),
        in_specs=[
            pl.BlockSpec((row_tile, D),
                         lambda p, i: (p * tiles_per_part + i, 0)),
            pl.BlockSpec((D, H), lambda p, i: (0, 0)),
            pl.BlockSpec((1, H), lambda p, i: (0, 0)),
        ],
        out_specs=pl.BlockSpec((None, M_pad, H), lambda p, i: (p, 0, 0)),
        compiler_params=pltpu.CompilerParams(
            dimension_semantics=("parallel", "arbitrary")),
        cost_estimate=cost_a,
    )(z2, w1c, b1)

    # ---- tiny glue (O(M*H)): finish mean, dot with w2, softmax over M --------
    acc_m = acc.sum(axis=0)[:M]                           # (M, H)
    w_mean = jnp.sum(acc_m * w2, axis=-1) / N             # (M,)
    beta = jax.nn.softmax(w_mean).astype(jnp.float32)     # (M,)

    # ---------------- Kernel B tiling -----------------------------------------
    per_row_b = 2 * M * D * dbytes + 2 * D * 4    # dbl-buffered in + dbl out
    n_tile = max(8, (vmem_budget_bytes // max(1, per_row_b)) // 8 * 8)
    n_tile = min(n_tile, _round_up(N, 8))
    N_pad = _round_up(N, n_tile)

    z2d = zc.reshape(N, M * D)                    # free view; lane-dense minor
    if N_pad != N:
        z2d = jnp.concatenate(
            [z2d, jnp.zeros((N_pad - N, M * D), compute_dtype)], axis=0)

    cost_b = pl.CostEstimate(
        flops=2 * N_pad * M * D,
        transcendentals=0,
        bytes_accessed=N_pad * M * D * dbytes + N_pad * D * 4)

    out = pl.pallas_call(
        functools.partial(_combine_kernel, M=M, D=D),
        out_shape=jax.ShapeDtypeStruct((N_pad, D), jnp.float32),
        grid=(N_pad // n_tile,),
        in_specs=[
            pl.BlockSpec(memory_space=pltpu.MemorySpace.SMEM),
            pl.BlockSpec((n_tile, M * D), lambda i: (i, 0)),
        ],
        out_specs=pl.BlockSpec((n_tile, D), lambda i: (i, 0)),
        compiler_params=pltpu.CompilerParams(
            dimension_semantics=("parallel",)),
        cost_estimate=cost_b,
    )(beta, z2d)

    return out[:N]


def semantic_attention_ref(z, w1, b1, w2):
    """Pure-JAX reference mirroring the PyTorch module."""
    h = jnp.tanh(jnp.einsum("nmd,dh->nmh", z, w1) + b1)        # (N, M, H)
    w = jnp.sum(h * w2, axis=-1, keepdims=True)                # (N, M, 1)
    w = w.mean(axis=0)                                         # (M, 1)
    beta = jax.nn.softmax(w, axis=0)                           # (M, 1)
    return jnp.sum(beta[None, :, :] * z, axis=1)               # (N, D)


def _make_inputs(key, N, M, D, H):
    kz, k1, k2, k3 = jax.random.split(key, 4)
    z = jax.random.normal(kz, (N, M, D), dtype=jnp.float32)
    lim1 = 1.0 / np.sqrt(D)
    lim2 = 1.0 / np.sqrt(H)
    w1 = jax.random.uniform(k1, (D, H), jnp.float32, -lim1, lim1)
    b1 = jax.random.uniform(k2, (1, H), jnp.float32, -lim1, lim1)
    w2 = jax.random.uniform(k3, (1, H), jnp.float32, -lim2, lim2)
    return z, w1, b1, w2


if __name__ == "__main__":
    key = jax.random.PRNGKey(0)
    k_a, k_b = jax.random.split(key)

    # Main shape: N nodes, M metapaths, in_size D (= hidden*heads), hidden H.
    N, M, D, H = 512, 4, 128, 128
    z, w1, b1, w2 = _make_inputs(k_a, N, M, D, H)
    ref = semantic_attention_ref(z, w1, b1, w2)

    # f32 validation path (tight tolerance).
    out_f32 = jax.block_until_ready(
        semantic_attention(z, w1, b1, w2, use_bf16=False))
    assert out_f32.shape == (N, D)
    np.testing.assert_allclose(np.asarray(out_f32), np.asarray(ref),
                               rtol=2e-3, atol=2e-3)

    # Default (bf16 z/W1) fast path: only z is rounded, so looser tolerance.
    out_bf16 = jax.block_until_ready(semantic_attention(z, w1, b1, w2))
    np.testing.assert_allclose(np.asarray(out_bf16), np.asarray(ref),
                               rtol=3e-2, atol=3e-2)

    # Ragged-shape sanity check (exercises host-side padding + in-kernel mask).
    N2, M2, D2, H2 = 77, 3, 96, 64
    z2_, w1_, b1_, w2_ = _make_inputs(k_b, N2, M2, D2, H2)
    ref2 = semantic_attention_ref(z2_, w1_, b1_, w2_)
    out2 = jax.block_until_ready(
        semantic_attention(z2_, w1_, b1_, w2_, use_bf16=False))
    assert out2.shape == (N2, D2)
    np.testing.assert_allclose(np.asarray(out2), np.asarray(ref2),
                               rtol=2e-3, atol=2e-3)

    print("KERNEL_OK")
</pallas_src>

<mosaic_0001>
module attributes {stable_mosaic.version = 11 : i64} {
  func.func @_proj_partial_kernel(%arg0: i32, %arg1: i32, %arg2: memref<2048x128xf32, #tpu.memory_space<vmem>>, %arg3: memref<128x128xf32, #tpu.memory_space<vmem>>, %arg4: memref<1x128xf32, #tpu.memory_space<vmem>>, %arg5: memref<1x8x128xf32, #tpu.memory_space<vmem>>) attributes {dimension_semantics = [#tpu.dimension_semantics<parallel>, #tpu.dimension_semantics<arbitrary>], iteration_bounds = array<i64: 1, 1>, scalar_prefetch = 0 : i64, scratch_operands = 0 : i64, tpu.core_type = #tpu.core_type<tc>, window_params = [{transform_indices = @transform_0, window_bounds = array<i64: 2048, 128>}, {pipeline_mode = #tpu.pipeline_mode<synchronous>, transform_indices = @transform_1, window_bounds = array<i64: 128, 128>}, {pipeline_mode = #tpu.pipeline_mode<synchronous>, transform_indices = @transform_2, window_bounds = array<i64: 1, 128>}, {transform_indices = @transform_3, window_bounds = array<i64: 1, 8, 128>}]} {
    %c0_i32 = arith.constant 0 : i32
    %0 = arith.cmpi eq, %arg1, %c0_i32 : i32
    %1 = arith.extui %0 : i1 to i32
    %c0_i32_0 = arith.constant 0 : i32
    %2 = arith.cmpi ne, %1, %c0_i32_0 : i32
    scf.if %2 {
      %cst_21 = arith.constant 0.000000e+00 : f32
      %47 = vector.broadcast %cst_21 : f32 to vector<8x128xf32>
      %c0_22 = arith.constant 0 : index
      %c0_23 = arith.constant 0 : index
      %c0_24 = arith.constant 0 : index
      %48 = vector.load %arg5[%c0_22, %c0_23, %c0_24] : memref<1x8x128xf32, #tpu.memory_space<vmem>>, vector<1x8x128xf32>
      %49 = vector.shape_cast %48 : vector<1x8x128xf32> to vector<8x128xf32>
      %50 = vector.shape_cast %47 : vector<8x128xf32> to vector<1x8x128xf32>
      tpu.vector_store %arg5[%c0_22, %c0_23, %c0_24], %50 {strides = array<i32>} : memref<1x8x128xf32, #tpu.memory_space<vmem>>, vector<1x8x128xf32>,
    } else {
    }
    %c0 = arith.constant 0 : index
    %c0_1 = arith.constant 0 : index
    %3 = vector.load %arg2[%c0, %c0_1] : memref<2048x128xf32, #tpu.memory_space<vmem>>, vector<2048x128xf32>
    %c0_2 = arith.constant 0 : index
    %c0_3 = arith.constant 0 : index
    %4 = vector.load %arg3[%c0_2, %c0_3] : memref<128x128xf32, #tpu.memory_space<vmem>>, vector<128x128xf32>
    %cst = arith.constant dense<0.000000e+00> : vector<2048x128xf32>
    %5 = tpu.matmul %3, %4, %cst {dimension_numbers = #tpu.dot_dimension_numbers<[1], [0], [0], [1], [0, 0, 1, 1], [], []>} : vector<2048x128xf32>, vector<128x128xf32>, vector<2048x128xf32> -> vector<2048x128xf32>
    %c0_4 = arith.constant 0 : index
    %c0_5 = arith.constant 0 : index
    %6 = vector.load %arg4[%c0_4, %c0_5] : memref<1x128xf32, #tpu.memory_space<vmem>>, vector<1x128xf32>
    %7 = vector.broadcast %6 : vector<1x128xf32> to vector<2048x128xf32>
    %8 = arith.addf %5, %7 : vector<2048x128xf32>
    %9 = math.tanh %8 : vector<2048x128xf32>
    %10 = tpu.iota {dimensions = array<i32: 1>} : vector<8x2048xi32>
    %11 = tpu.iota {dimensions = array<i32: 0>} : vector<8x2048xi32>
    %c1_i32 = arith.constant 1 : i32
    %12 = arith.muli %arg0, %c1_i32 : i32
    %13 = arith.addi %12, %arg1 : i32
    %c2048_i32 = arith.constant 2048 : i32
    %14 = arith.muli %13, %c2048_i32 : i32
    %15 = vector.broadcast %14 : i32 to vector<8x2048xi32>
    %16 = arith.addi %10, %15 : vector<8x2048xi32>
    %c2048_i32_6 = arith.constant 2048 : i32
    %17 = vector.broadcast %c2048_i32_6 : i32 to vector<8x2048xi32>
    %18 = arith.cmpi slt, %16, %17 : vector<8x2048xi32>
    %c4_i32 = arith.constant 4 : i32
    %c0_i32_7 = arith.constant 0 : i32
    %19 = arith.cmpi eq, %c4_i32, %c0_i32_7 : i32
    %c1_i32_8 = arith.constant 1 : i32
    %20 = arith.select %19, %c1_i32_8, %c4_i32 : i32
    %21 = vector.broadcast %20 : i32 to vector<8x2048xi32>
    %22 = arith.remsi %10, %21 : vector<8x2048xi32>
    %c0_i32_9 = arith.constant 0 : i32
    %23 = vector.broadcast %c0_i32_9 : i32 to vector<8x2048xi32>
    %24 = arith.cmpi ne, %22, %23 : vector<8x2048xi32>
    %c0_i32_10 = arith.constant 0 : i32
    %25 = vector.broadcast %c0_i32_10 : i32 to vector<8x2048xi32>
    %26 = arith.cmpi slt, %22, %25 : vector<8x2048xi32>
    %c0_i32_11 = arith.constant 0 : i32
    %27 = arith.cmpi slt, %20, %c0_i32_11 : i32
    %28 = vector.broadcast %27 : i1 to vector<8x2048xi1>
    %29 = vector.broadcast %28 : vector<8x2048xi1> to vector<8x2048xi1>
    %30 = arith.xori %26, %29 : vector<8x2048xi1>
    %31 = arith.andi %30, %24 : vector<8x2048xi1>
    %32 = vector.broadcast %20 : i32 to vector<8x2048xi32>
    %33 = arith.addi %22, %32 : vector<8x2048xi32>
    %34 = arith.select %31, %33, %22 : vector<8x2048xi1>, vector<8x2048xi32>
    %35 = arith.cmpi eq, %34, %11 : vector<8x2048xi32>
    %36 = arith.andi %35, %18 : vector<8x2048xi1>
    %cst_12 = arith.constant 1.000000e+00 : f32
    %cst_13 = arith.constant 0.000000e+00 : f32
    %37 = vector.broadcast %cst_12 : f32 to vector<8x2048xf32>
    %38 = vector.broadcast %cst_13 : f32 to vector<8x2048xf32>
    %39 = arith.select %36, %37, %38 : vector<8x2048xi1>, vector<8x2048xf32>
    %c0_14 = arith.constant 0 : index
    %c0_15 = arith.constant 0 : index
    %c0_16 = arith.constant 0 : index
    %40 = vector.load %arg5[%c0_14, %c0_15, %c0_16] : memref<1x8x128xf32, #tpu.memory_space<vmem>>, vector<1x8x128xf32>
    %41 = vector.shape_cast %40 : vector<1x8x128xf32> to vector<8x128xf32>
    %cst_17 = arith.constant dense<0.000000e+00> : vector<8x128xf32>
    %42 = tpu.matmul %39, %9, %cst_17 {dimension_numbers = #tpu.dot_dimension_numbers<[1], [0], [0], [1], [0, 0, 1, 1], [], []>} : vector<8x2048xf32>, vector<2048x128xf32>, vector<8x128xf32> -> vector<8x128xf32>
    %43 = arith.addf %41, %42 : vector<8x128xf32>
    %c0_18 = arith.constant 0 : index
    %c0_19 = arith.constant 0 : index
    %c0_20 = arith.constant 0 : index
    %44 = vector.load %arg5[%c0_18, %c0_19, %c0_20] : memref<1x8x128xf32, #tpu.memory_space<vmem>>, vector<1x8x128xf32>
    %45 = vector.shape_cast %44 : vector<1x8x128xf32> to vector<8x128xf32>
    %46 = vector.shape_cast %43 : vector<8x128xf32> to vector<1x8x128xf32>
    tpu.vector_store %arg5[%c0_18, %c0_19, %c0_20], %46 {strides = array<i32>} : memref<1x8x128xf32, #tpu.memory_space<vmem>>, vector<1x8x128xf32>,
    return
  }
  func.func @transform_0(%arg0: i32, %arg1: i32) -> (i32, i32) {
    %c1_i32 = arith.constant 1 : i32
    %0 = arith.muli %arg0, %c1_i32 : i32
    %1 = arith.addi %0, %arg1 : i32
    %c0_i32 = arith.constant 0 : i32
    %c0_i32_0 = arith.constant 0 : i32
    return %1, %c0_i32 : i32, i32
  }
  func.func @transform_1(%arg0: i32, %arg1: i32) -> (i32, i32) {
    %c0_i32 = arith.constant 0 : i32
    %c0_i32_0 = arith.constant 0 : i32
    %c0_i32_1 = arith.constant 0 : i32
    return %c0_i32, %c0_i32_0 : i32, i32
  }
  func.func @transform_2(%arg0: i32, %arg1: i32) -> (i32, i32) {
    %c0_i32 = arith.constant 0 : i32
    %c0_i32_0 = arith.constant 0 : i32
    %c0_i32_1 = arith.constant 0 : i32
    return %c0_i32, %c0_i32_0 : i32, i32
  }
  func.func @transform_3(%arg0: i32, %arg1: i32) -> (i32, i32, i32) {
    %c0_i32 = arith.constant 0 : i32
    %c0_i32_0 = arith.constant 0 : i32
    %c0_i32_1 = arith.constant 0 : i32
    return %arg0, %c0_i32, %c0_i32_0 : i32, i32, i32
  }
}

</mosaic_0001>

<llo_original>
// kernel: tpu_custom_call.1
$region0: #{tpu_custom_call.1}
  #allocation0 [shape = 'u32[]', space=smem, size = 0x4, offset = 0x4, fixed_abs, tag = 'smem constant byte address 0x4 - core index']
  #allocation1 [shape = 'u32[144,128]{1,0:T(1,128)}', space=vmem, size = 0x12000, scoped, tag = 'internal scratch']
  %s0 = inlined_call_operand.hbm [shape: f32[2048,128], index: 0, kind: input, shape index: {}]
  %s1 = inlined_call_operand.hbm [shape: f32[128,128], index: 1, kind: input, shape index: {}]
  %s2 = inlined_call_operand.vmem [shape: f32[1,128], index: 2, kind: input, shape index: {}]
  %s3 = inlined_call_operand.hbm [shape: f32[1,8,128], index: 3, kind: output, shape index: {}]
  %s4 = sld [smem:[#allocation0]]
  $region34: #{tpu_custom_call.1} parent=0
    _
  %s6 = ssub.s32 1, %s4
  %s7 = scalar_select 0, %s6, %s4
  $region1: #{tpu_custom_call.1} parent=0
    #allocation2 [shape = 'u8[1048576]{0}', space=vmem, size = 0x100000, scoped, tag = 'input window, operand 0, single buffered']
    #allocation3 [shape = 's32[1]{0}', space=sflag, size = 0x4, scoped, tag = 'scoped memory for tpu_custom_call.1']
    #allocation4 [shape = 's32[1]{0}', space=sflag, size = 0x4, scoped, tag = 'scoped memory for tpu_custom_call.1']
    #allocation5 [shape = 'u8[65536]{0}', space=vmem, size = 0x10000, scoped, tag = 'input window, operand 1, single buffered']
    #allocation6 [shape = 's32[1]{0}', space=sflag, size = 0x4, scoped, tag = 'scoped memory for tpu_custom_call.1']
    #allocation7 [shape = 'u8[4096]{0}', space=vmem, size = 0x1000, scoped, tag = 'output window, operand 0, single buffered']
    %8 = vsyncpa [#allocation3], 0
    %9 = vsyncpa [#allocation6], 0
    %10 = vsyncpa [#allocation4], 0
    // Predicated region
    $region2: #{tpu_custom_call.1} parent=1 // pred_check
      _
    $region3: #{tpu_custom_call.1} parent=1 // pred_check_branch
      %12 = sbr.rel (0) target = $region5
    $region4: #{tpu_custom_call.1} parent=1 // pred_region
      %s13 = sadd.s32 0, 0
      %s14 = smul.u32 256, %s13
      %s16 = ssub.s32 32768, 32768
      %17 = vsyncadd [#allocation3], %s16
      %s18 = smul.addr %s14, 128
      %s19 = scalar_lea.hbm %s0, %s18
      %s20 = sshll.u32 [#allocation2], 4
      %s21 = int_to_ptr.vmem [resolvable:$true] %s20
      %26 = dma.hbm_to_vmem [thread:$0]  %s19, 32768, %s21, [#allocation3], 128, 128, 8
    $region5: #{tpu_custom_call.1} parent=1 // pred_fallthru
      _
    // Predicated region
    $region6: #{tpu_custom_call.1} parent=1 // pred_check
      _
    $region7: #{tpu_custom_call.1} parent=1 // pred_check_branch
      %28 = sbr.rel (0) target = $region9
    $region8: #{tpu_custom_call.1} parent=1 // pred_region
      %s30 = ssub.s32 2048, 2048
      %31 = vsyncadd [#allocation6], %s30
      %s32 = sshll.u32 [#allocation5], 4
      %s33 = int_to_ptr.vmem [resolvable:$true] %s32
      %38 = dma.hbm_to_vmem [thread:$0]  %s1, 2048, %s33, [#allocation6], 128, 128, 8
    $region9: #{tpu_custom_call.1} parent=1 // pred_fallthru
      _
    // Predicated region
    $region10: #{tpu_custom_call.1} parent=1 // pred_check
      _
    $region11: #{tpu_custom_call.1} parent=1 // pred_check_branch
      %40 = sbr.rel (0) target = $region13
    $region12: #{tpu_custom_call.1} parent=1 // pred_region
      _
    $region13: #{tpu_custom_call.1} parent=1 // pred_fallthru
      _
    // Predicated region
    $region14: #{tpu_custom_call.1} parent=1 // pred_check
      _
    $region15: #{tpu_custom_call.1} parent=1 // pred_check_branch
      %42 = sbr.rel (0) target = $region17
    $region16: #{tpu_custom_call.1} parent=1 // pred_region
      %43 = dma.done [#allocation3], 32768
    $region17: #{tpu_custom_call.1} parent=1 // pred_fallthru
      _
    // Predicated region
    $region18: #{tpu_custom_call.1} parent=1 // pred_check
      _
    $region19: #{tpu_custom_call.1} parent=1 // pred_check_branch
      %45 = sbr.rel (0) target = $region21
    $region20: #{tpu_custom_call.1} parent=1 // pred_region
      %46 = dma.done [#allocation6], 2048
    $region21: #{tpu_custom_call.1} parent=1 // pred_fallthru
      _
    %s47 = sadd.s32 0, 0
    %s48 = smul.u32 256, %s47
    %p49 = scmp.eq.s32.totalorder 0, 0
    // Predicated region
    $region22: #{tpu_custom_call.1} parent=1 // pred_check
      %p50 = pneg %p49
    $region23: #{tpu_custom_call.1} parent=1 // pred_check_branch
      %52 = sbr.rel (%p50) target = $region25
    $region24: #{tpu_custom_call.1} parent=1 // pred_region
      %53 = vst [vmem:[#allocation7] sm:$0xff] 0.0
    $region25: #{tpu_custom_call.1} parent=1 // pred_fallthru
      _
    %v54 = vld [vmem:[#allocation2] sm:$0xff]
    %v55 = vld [vmem:[#allocation2 + $0x8] sm:$0xff]
    %v56 = vld [vmem:[#allocation2 + $0x10] sm:$0xff]
    %v57 = vld [vmem:[#allocation2 + $0x18] sm:$0xff]
    %v58 = vld [vmem:[#allocation2 + $0x20] sm:$0xff]
    %v59 = vld [vmem:[#allocation2 + $0x28] sm:$0xff]
    %v60 = vld [vmem:[#allocation2 + $0x30] sm:$0xff]
    %v61 = vld [vmem:[#allocation2 + $0x38] sm:$0xff]
    %v62 = vld [vmem:[#allocation2 + $0x40] sm:$0xff]
    %v63 = vld [vmem:[#allocation2 + $0x48] sm:$0xff]
    %v64 = vld [vmem:[#allocation2 + $0x50] sm:$0xff]
    %v65 = vld [vmem:[#allocation2 + $0x58] sm:$0xff]
    %v66 = vld [vmem:[#allocation2 + $0x60] sm:$0xff]
    %v67 = vld [vmem:[#allocation2 + $0x68] sm:$0xff]
    %v68 = vld [vmem:[#allocation2 + $0x70] sm:$0xff]
    %v69 = vld [vmem:[#allocation2 + $0x78] sm:$0xff]
    %v70 = vld [vmem:[#allocation2 + $0x80] sm:$0xff]
    %v71 = vld [vmem:[#allocation2 + $0x88] sm:$0xff]
    %v72 = vld [vmem:[#allocation2 + $0x90] sm:$0xff]
    %v73 = vld [vmem:[#allocation2 + $0x98] sm:$0xff]
    %v74 = vld [vmem:[#allocation2 + $0xa0] sm:$0xff]
    %v75 = vld [vmem:[#allocation2 + $0xa8] sm:$0xff]
    %v76 = vld [vmem:[#allocation2 + $0xb0] sm:$0xff]
    %v77 = vld [vmem:[#allocation2 + $0xb8] sm:$0xff]
    %v78 = vld [vmem:[#allocation2 + $0xc0] sm:$0xff]
    %v79 = vld [vmem:[#allocation2 + $0xc8] sm:$0xff]
    %v80 = vld [vmem:[#allocation2 + $0xd0] sm:$0xff]
    %v81 = vld [vmem:[#allocation2 + $0xd8] sm:$0xff]
    %v82 = vld [vmem:[#allocation2 + $0xe0] sm:$0xff]
    %v83 = vld [vmem:[#allocation2 + $0xe8] sm:$0xff]
    %v84 = vld [vmem:[#allocation2 + $0xf0] sm:$0xff]
    %v85 = vld [vmem:[#allocation2 + $0xf8] sm:$0xff]
    %v86 = vld [vmem:[#allocation2 + $0x100] sm:$0xff]
    %v87 = vld [vmem:[#allocation2 + $0x108] sm:$0xff]
    %v88 = vld [vmem:[#allocation2 + $0x110] sm:$0xff]
    %v89 = vld [vmem:[#allocation2 + $0x118] sm:$0xff]
    %v90 = vld [vmem:[#allocation2 + $0x120] sm:$0xff]
    %v91 = vld [vmem:[#allocation2 + $0x128] sm:$0xff]
    %v92 = vld [vmem:[#allocation2 + $0x130] sm:$0xff]
    %v93 = vld [vmem:[#allocation2 + $0x138] sm:$0xff]
    %v94 = vld [vmem:[#allocation2 + $0x140] sm:$0xff]
    %v95 = vld [vmem:[#allocation2 + $0x148] sm:$0xff]
    %v96 = vld [vmem:[#allocation2 + $0x150] sm:$0xff]
    %v97 = vld [vmem:[#allocation2 + $0x158] sm:$0xff]
    %v98 = vld [vmem:[#allocation2 + $0x160] sm:$0xff]
    %v99 = vld [vmem:[#allocation2 + $0x168] sm:$0xff]
    %v100 = vld [vmem:[#allocation2 + $0x170] sm:$0xff]
    %v101 = vld [vmem:[#allocation2 + $0x178] sm:$0xff]
    %v102 = vld [vmem:[#allocation2 + $0x180] sm:$0xff]
    %v103 = vld [vmem:[#allocation2 + $0x188] sm:$0xff]
    %v104 = vld [vmem:[#allocation2 + $0x190] sm:$0xff]
    %v105 = vld [vmem:[#allocation2 + $0x198] sm:$0xff]
    %v106 = vld [vmem:[#allocation2 + $0x1a0] sm:$0xff]
    %v107 = vld [vmem:[#allocation2 + $0x1a8] sm:$0xff]
    %v108 = vld [vmem:[#allocation2 + $0x1b0] sm:$0xff]
    %v109 = vld [vmem:[#allocation2 + $0x1b8] sm:$0xff]
    %v110 = vld [vmem:[#allocation2 + $0x1c0] sm:$0xff]
    %v111 = vld [vmem:[#allocation2 + $0x1c8] sm:$0xff]
    %v112 = vld [vmem:[#allocation2 + $0x1d0] sm:$0xff]
    %v113 = vld [vmem:[#allocation2 + $0x1d8] sm:$0xff]
    %v114 = vld [vmem:[#allocation2 + $0x1e0] sm:$0xff]
    %v115 = vld [vmem:[#allocation2 + $0x1e8] sm:$0xff]
    %v116 = vld [vmem:[#allocation2 + $0x1f0] sm:$0xff]
    %v117 = vld [vmem:[#allocation2 + $0x1f8] sm:$0xff]
    %v118 = vld [vmem:[#allocation2 + $0x200] sm:$0xff]
    %v119 = vld [vmem:[#allocation2 + $0x208] sm:$0xff]
    %v120 = vld [vmem:[#allocation2 + $0x210] sm:$0xff]
    %v121 = vld [vmem:[#allocation2 + $0x218] sm:$0xff]
    %v122 = vld [vmem:[#allocation2 + $0x220] sm:$0xff]
    %v123 = vld [vmem:[#allocation2 + $0x228] sm:$0xff]
    %v124 = vld [vmem:[#allocation2 + $0x230] sm:$0xff]
    %v125 = vld [vmem:[#allocation2 + $0x238] sm:$0xff]
    %v126 = vld [vmem:[#allocation2 + $0x240] sm:$0xff]
    %v127 = vld [vmem:[#allocation2 + $0x248] sm:$0xff]
    %v128 = vld [vmem:[#allocation2 + $0x250] sm:$0xff]
    %v129 = vld [vmem:[#allocation2 + $0x258] sm:$0xff]
    %v130 = vld [vmem:[#allocation2 + $0x260] sm:$0xff]
    %v131 = vld [vmem:[#allocation2 + $0x268] sm:$0xff]
    %v132 = vld [vmem:[#allocation2 + $0x270] sm:$0xff]
    %v133 = vld [vmem:[#allocation2 + $0x278] sm:$0xff]
    %v134 = vld [vmem:[#allocation2 + $0x280] sm:$0xff]
    %v135 = vld [vmem:[#allocation2 + $0x288] sm:$0xff]
    %v136 = vld [vmem:[#allocation2 + $0x290] sm:$0xff]
    %v137 = vld [vmem:[#allocation2 + $0x298] sm:$0xff]
    %v138 = vld [vmem:[#allocation2 + $0x2a0] sm:$0xff]
    %v139 = vld [vmem:[#allocation2 + $0x2a8] sm:$0xff]
    %v140 = vld [vmem:[#allocation2 + $0x2b0] sm:$0xff]
    %v141 = vld [vmem:[#allocation2 + $0x2b8] sm:$0xff]
    %v142 = vld [vmem:[#allocation2 + $0x2c0] sm:$0xff]
    %v143 = vld [vmem:[#allocation2 + $0x2c8] sm:$0xff]
    %v144 = vld [vmem:[#allocation2 + $0x2d0] sm:$0xff]
    %v145 = vld [vmem:[#allocation2 + $0x2d8] sm:$0xff]
    %v146 = vld [vmem:[#allocation2 + $0x2e0] sm:$0xff]
    %v147 = vld [vmem:[#allocation2 + $0x2e8] sm:$0xff]
    %v148 = vld [vmem:[#allocation2 + $0x2f0] sm:$0xff]
    %v149 = vld [vmem:[#allocation2 + $0x2f8] sm:$0xff]
    %v150 = vld [vmem:[#allocation2 + $0x300] sm:$0xff]
    %v151 = vld [vmem:[#allocation2 + $0x308] sm:$0xff]
    %v152 = vld [vmem:[#allocation2 + $0x310] sm:$0xff]
    %v153 = vld [vmem:[#allocation2 + $0x318] sm:$0xff]
    %v154 = vld [vmem:[#allocation2 + $0x320] sm:$0xff]
    %v155 = vld [vmem:[#allocation2 + $0x328] sm:$0xff]
    %v156 = vld [vmem:[#allocation2 + $0x330] sm:$0xff]
    %v157 = vld [vmem:[#allocation2 + $0x338] sm:$0xff]
    %v158 = vld [vmem:[#allocation2 + $0x340] sm:$0xff]
    %v159 = vld [vmem:[#allocation2 + $0x348] sm:$0xff]
    %v160 = vld [vmem:[#allocation2 + $0x350] sm:$0xff]
    %v161 = vld [vmem:[#allocation2 + $0x358] sm:$0xff]
    %v162 = vld [vmem:[#allocation2 + $0x360] sm:$0xff]
    %v163 = vld [vmem:[#allocation2 + $0x368] sm:$0xff]
    %v164 = vld [vmem:[#allocation2 + $0x370] sm:$0xff]
    %v165 = vld [vmem:[#allocation2 + $0x378] sm:$0xff]
    %v166 = vld [vmem:[#allocation2 + $0x380] sm:$0xff]
    %v167 = vld [vmem:[#allocation2 + $0x388] sm:$0xff]
    %v168 = vld [vmem:[#allocation2 + $0x390] sm:$0xff]
    %v169 = vld [vmem:[#allocation2 + $0x398] sm:$0xff]
    %v170 = vld [vmem:[#allocation2 + $0x3a0] sm:$0xff]
    %v171 = vld [vmem:[#allocation2 + $0x3a8] sm:$0xff]
    %v172 = vld [vmem:[#allocation2 + $0x3b0] sm:$0xff]
    %v173 = vld [vmem:[#allocation2 + $0x3b8] sm:$0xff]
    %v174 = vld [vmem:[#allocation2 + $0x3c0] sm:$0xff]
    %v175 = vld [vmem:[#allocation2 + $0x3c8] sm:$0xff]
    %v176 = vld [vmem:[#allocation2 + $0x3d0] sm:$0xff]
    %v177 = vld [vmem:[#allocation2 + $0x3d8] sm:$0xff]
    %v178 = vld [vmem:[#allocation2 + $0x3e0] sm:$0xff]
    %v179 = vld [vmem:[#allocation2 + $0x3e8] sm:$0xff]
    %v180 = vld [vmem:[#allocation2 + $0x3f0] sm:$0xff]
    %v181 = vld [vmem:[#allocation2 + $0x3f8] sm:$0xff]
    %v182 = vld [vmem:[#allocation2 + $0x400] sm:$0xff]
    %v183 = vld [vmem:[#allocation2 + $0x408] sm:$0xff]
    %v184 = vld [vmem:[#allocation2 + $0x410] sm:$0xff]
    %v185 = vld [vmem:[#allocation2 + $0x418] sm:$0xff]
    %v186 = vld [vmem:[#allocation2 + $0x420] sm:$0xff]
    %v187 = vld [vmem:[#allocation2 + $0x428] sm:$0xff]
    %v188 = vld [vmem:[#allocation2 + $0x430] sm:$0xff]
    %v189 = vld [vmem:[#allocation2 + $0x438] sm:$0xff]
    %v190 = vld [vmem:[#allocation2 + $0x440] sm:$0xff]
    %v191 = vld [vmem:[#allocation2 + $0x448] sm:$0xff]
    %v192 = vld [vmem:[#allocation2 + $0x450] sm:$0xff]
    %v193 = vld [vmem:[#allocation2 + $0x458] sm:$0xff]
    %v194 = vld [vmem:[#allocation2 + $0x460] sm:$0xff]
    %v195 = vld [vmem:[#allocation2 + $0x468] sm:$0xff]
    %v196 = vld [vmem:[#allocation2 + $0x470] sm:$0xff]
    %v197 = vld [vmem:[#allocation2 + $0x478] sm:$0xff]
    %v198 = vld [vmem:[#allocation2 + $0x480] sm:$0xff]
    %v199 = vld [vmem:[#allocation2 + $0x488] sm:$0xff]
    %v200 = vld [vmem:[#allocation2 + $0x490] sm:$0xff]
    %v201 = vld [vmem:[#allocation2 + $0x498] sm:$0xff]
    %v202 = vld [vmem:[#allocation2 + $0x4a0] sm:$0xff]
    %v203 = vld [vmem:[#allocation2 + $0x4a8] sm:$0xff]
    %v204 = vld [vmem:[#allocation2 + $0x4b0] sm:$0xff]
    %v205 = vld [vmem:[#allocation2 + $0x4b8] sm:$0xff]
    %v206 = vld [vmem:[#allocation2 + $0x4c0] sm:$0xff]
    %v207 = vld [vmem:[#allocation2 + $0x4c8] sm:$0xff]
    %v208 = vld [vmem:[#allocation2 + $0x4d0] sm:$0xff]
    %v209 = vld [vmem:[#allocation2 + $0x4d8] sm:$0xff]
    %v210 = vld [vmem:[#allocation2 + $0x4e0] sm:$0xff]
    %v211 = vld [vmem:[#allocation2 + $0x4e8] sm:$0xff]
    %v212 = vld [vmem:[#allocation2 + $0x4f0] sm:$0xff]
    %v213 = vld [vmem:[#allocation2 + $0x4f8] sm:$0xff]
    %v214 = vld [vmem:[#allocation2 + $0x500] sm:$0xff]
    %v215 = vld [vmem:[#allocation2 + $0x508] sm:$0xff]
    %v216 = vld [vmem:[#allocation2 + $0x510] sm:$0xff]
    %v217 = vld [vmem:[#allocation2 + $0x518] sm:$0xff]
    %v218 = vld [vmem:[#allocation2 + $0x520] sm:$0xff]
    %v219 = vld [vmem:[#allocation2 + $0x528] sm:$0xff]
    %v220 = vld [vmem:[#allocation2 + $0x530] sm:$0xff]
    %v221 = vld [vmem:[#allocation2 + $0x538] sm:$0xff]
    %v222 = vld [vmem:[#allocation2 + $0x540] sm:$0xff]
    %v223 = vld [vmem:[#allocation2 + $0x548] sm:$0xff]
    %v224 = vld [vmem:[#allocation2 + $0x550] sm:$0xff]
    %v225 = vld [vmem:[#allocation2 + $0x558] sm:$0xff]
    %v226 = vld [vmem:[#allocation2 + $0x560] sm:$0xff]
    %v227 = vld [vmem:[#allocation2 + $0x568] sm:$0xff]
    %v228 = vld [vmem:[#allocation2 + $0x570] sm:$0xff]
    %v229 = vld [vmem:[#allocation2 + $0x578] sm:$0xff]
    %v230 = vld [vmem:[#allocation2 + $0x580] sm:$0xff]
    %v231 = vld [vmem:[#allocation2 + $0x588] sm:$0xff]
    %v232 = vld [vmem:[#allocation2 + $0x590] sm:$0xff]
    %v233 = vld [vmem:[#allocation2 + $0x598] sm:$0xff]
    %v234 = vld [vmem:[#allocation2 + $0x5a0] sm:$0xff]
    %v235 = vld [vmem:[#allocation2 + $0x5a8] sm:$0xff]
    %v236 = vld [vmem:[#allocation2 + $0x5b0] sm:$0xff]
    %v237 = vld [vmem:[#allocation2 + $0x5b8] sm:$0xff]
    %v238 = vld [vmem:[#allocation2 + $0x5c0] sm:$0xff]
    %v239 = vld [vmem:[#allocation2 + $0x5c8] sm:$0xff]
    %v240 = vld [vmem:[#allocation2 + $0x5d0] sm:$0xff]
    %v241 = vld [vmem:[#allocation2 + $0x5d8] sm:$0xff]
    %v242 = vld [vmem:[#allocation2 + $0x5e0] sm:$0xff]
    %v243 = vld [vmem:[#allocation2 + $0x5e8] sm:$0xff]
    %v244 = vld [vmem:[#allocation2 + $0x5f0] sm:$0xff]
    %v245 = vld [vmem:[#allocation2 + $0x5f8] sm:$0xff]
    %v246 = vld [vmem:[#allocation2 + $0x600] sm:$0xff]
    %v247 = vld [vmem:[#allocation2 + $0x608] sm:$0xff]
    %v248 = vld [vmem:[#allocation2 + $0x610] sm:$0xff]
    %v249 = vld [vmem:[#allocation2 + $0x618] sm:$0xff]
    %v250 = vld [vmem:[#allocation2 + $0x620] sm:$0xff]
    %v251 = vld [vmem:[#allocation2 + $0x628] sm:$0xff]
    %v252 = vld [vmem:[#allocation2 + $0x630] sm:$0xff]
    %v253 = vld [vmem:[#allocation2 + $0x638] sm:$0xff]
    %v254 = vld [vmem:[#allocation2 + $0x640] sm:$0xff]
    %v255 = vld [vmem:[#allocation2 + $0x648] sm:$0xff]
    %v256 = vld [vmem:[#allocation2 + $0x650] sm:$0xff]
    %v257 = vld [vmem:[#allocation2 + $0x658] sm:$0xff]
    %v258 = vld [vmem:[#allocation2 + $0x660] sm:$0xff]
    %v259 = vld [vmem:[#allocation2 + $0x668] sm:$0xff]
    %v260 = vld [vmem:[#allocation2 + $0x670] sm:$0xff]
    %v261 = vld [vmem:[#allocation2 + $0x678] sm:$0xff]
    %v262 = vld [vmem:[#allocation2 + $0x680] sm:$0xff]
    %v263 = vld [vmem:[#allocation2 + $0x688] sm:$0xff]
    %v264 = vld [vmem:[#allocation2 + $0x690] sm:$0xff]
    %v265 = vld [vmem:[#allocation2 + $0x698] sm:$0xff]
    %v266 = vld [vmem:[#allocation2 + $0x6a0] sm:$0xff]
    %v267 = vld [vmem:[#allocation2 + $0x6a8] sm:$0xff]
    %v268 = vld [vmem:[#allocation2 + $0x6b0] sm:$0xff]
    %v269 = vld [vmem:[#allocation2 + $0x6b8] sm:$0xff]
    %v270 = vld [vmem:[#allocation2 + $0x6c0] sm:$0xff]
    %v271 = vld [vmem:[#allocation2 + $0x6c8] sm:$0xff]
    %v272 = vld [vmem:[#allocation2 + $0x6d0] sm:$0xff]
    %v273 = vld [vmem:[#allocation2 + $0x6d8] sm:$0xff]
    %v274 = vld [vmem:[#allocation2 + $0x6e0] sm:$0xff]
    %v275 = vld [vmem:[#allocation2 + $0x6e8] sm:$0xff]
    %v276 = vld [vmem:[#allocation2 + $0x6f0] sm:$0xff]
    %v277 = vld [vmem:[#allocation2 + $0x6f8] sm:$0xff]
    %v278 = vld [vmem:[#allocation2 + $0x700] sm:$0xff]
    %v279 = vld [vmem:[#allocation2 + $0x708] sm:$0xff]
    %v280 = vld [vmem:[#allocation2 + $0x710] sm:$0xff]
    %v281 = vld [vmem:[#allocation2 + $0x718] sm:$0xff]
    %v282 = vld [vmem:[#allocation2 + $0x720] sm:$0xff]
    %v283 = vld [vmem:[#allocation2 + $0x728] sm:$0xff]
    %v284 = vld [vmem:[#allocation2 + $0x730] sm:$0xff]
    %v285 = vld [vmem:[#allocation2 + $0x738] sm:$0xff]
    %v286 = vld [vmem:[#allocation2 + $0x740] sm:$0xff]
    %v287 = vld [vmem:[#allocation2 + $0x748] sm:$0xff]
    %v288 = vld [vmem:[#allocation2 + $0x750] sm:$0xff]
    %v289 = vld [vmem:[#allocation2 + $0x758] sm:$0xff]
    %v290 = vld [vmem:[#allocation2 + $0x760] sm:$0xff]
    %v291 = vld [vmem:[#allocation2 + $0x768] sm:$0xff]
    %v292 = vld [vmem:[#allocation2 + $0x770] sm:$0xff]
    %v293 = vld [vmem:[#allocation2 + $0x778] sm:$0xff]
    %v294 = vld [vmem:[#allocation2 + $0x780] sm:$0xff]
    %v295 = vld [vmem:[#allocation2 + $0x788] sm:$0xff]
    %v296 = vld [vmem:[#allocation2 + $0x790] sm:$0xff]
    %v297 = vld [vmem:[#allocation2 + $0x798] sm:$0xff]
    %v298 = vld [vmem:[#allocation2 + $0x7a0] sm:$0xff]
    %v299 = vld [vmem:[#allocation2 + $0x7a8] sm:$0xff]
    %v300 = vld [vmem:[#allocation2 + $0x7b0] sm:$0xff]
    %v301 = vld [vmem:[#allocation2 + $0x7b8] sm:$0xff]
    %v302 = vld [vmem:[#allocation2 + $0x7c0] sm:$0xff]
    %v303 = vld [vmem:[#allocation2 + $0x7c8] sm:$0xff]
    %v304 = vld [vmem:[#allocation2 + $0x7d0] sm:$0xff]
    %v305 = vld [vmem:[#allocation2 + $0x7d8] sm:$0xff]
    %v306 = vld [vmem:[#allocation2 + $0x7e0] sm:$0xff]
    %v307 = vld [vmem:[#allocation2 + $0x7e8] sm:$0xff]
    %v308 = vld [vmem:[#allocation2 + $0x7f0] sm:$0xff]
    %v309 = vld [vmem:[#allocation2 + $0x7f8] sm:$0xff]
    %v310 = vld [vmem:[#allocation5] sm:$0xff]
    %v311 = vld [vmem:[#allocation5 + $0x8] sm:$0xff]
    %v312 = vld [vmem:[#allocation5 + $0x10] sm:$0xff]
    %v313 = vld [vmem:[#allocation5 + $0x18] sm:$0xff]
    %v314 = vld [vmem:[#allocation5 + $0x20] sm:$0xff]
    %v315 = vld [vmem:[#allocation5 + $0x28] sm:$0xff]
    %v316 = vld [vmem:[#allocation5 + $0x30] sm:$0xff]
    %v317 = vld [vmem:[#allocation5 + $0x38] sm:$0xff]
    %v318 = vld [vmem:[#allocation5 + $0x40] sm:$0xff]
    %v319 = vld [vmem:[#allocation5 + $0x48] sm:$0xff]
    %v320 = vld [vmem:[#allocation5 + $0x50] sm:$0xff]
    %v321 = vld [vmem:[#allocation5 + $0x58] sm:$0xff]
    %v322 = vld [vmem:[#allocation5 + $0x60] sm:$0xff]
    %v323 = vld [vmem:[#allocation5 + $0x68] sm:$0xff]
    %v324 = vld [vmem:[#allocation5 + $0x70] sm:$0xff]
    %v325 = vld [vmem:[#allocation5 + $0x78] sm:$0xff]
    %v326 = vld [vmem:[%s2] sm:$0x1]
    %v328 = vlaneseq
    %v329 = vshrl.u32 %v328, 7
    %v330 = vsub.s32 0, %v329
    %v331 = vrot.slane %v326, %v330
    %333 = vmatprep.subr.mxu0 0.0
    %334 = vmatpush1.msra.mxu0 %v310
    %335 = vmatprep.subr.mxu0 0.0
    %336 = vmatpush1.msra.mxu0 %v311
    %337 = vmatprep.subr.mxu0 0.0
    %338 = vmatpush1.msra.mxu0 %v312
    %339 = vmatprep.subr.mxu0 0.0
    %340 = vmatpush1.msra.mxu0 %v313
    %341 = vmatprep.subr.mxu0 0.0
    %342 = vmatpush1.msra.mxu0 %v314
    %343 = vmatprep.subr.mxu0 0.0
    %344 = vmatpush1.msra.mxu0 %v315
    %345 = vmatprep.subr.mxu0 0.0
    %346 = vmatpush1.msra.mxu0 %v316
    %347 = vmatprep.subr.mxu0 0.0
    %348 = vmatpush1.msra.mxu0 %v317
    %349 = vmatprep.subr.mxu0 0.0
    %350 = vmatpush1.msra.mxu0 %v318
    %351 = vmatprep.subr.mxu0 0.0
    %352 = vmatpush1.msra.mxu0 %v319
    %353 = vmatprep.subr.mxu0 0.0
    %354 = vmatpush1.msra.mxu0 %v320
    %355 = vmatprep.subr.mxu0 0.0
    %356 = vmatpush1.msra.mxu0 %v321
    %357 = vmatprep.subr.mxu0 0.0
    %358 = vmatpush1.msra.mxu0 %v322
    %359 = vmatprep.subr.mxu0 0.0
    %360 = vmatpush1.msra.mxu0 %v323
    %361 = vmatprep.subr.mxu0 0.0
    %362 = vmatpush1.msra.mxu0 %v324
    %363 = vmatprep.subr.mxu0 0.0
    %364 = vmatpush1.msra.mxu0 %v325
    %365 = vmatprep.subr.mxu0 0.0
    %366 = vmatpush1.msra.mxu0 0.0
    %367 = vmatprep.subr.mxu0 0.0
    %368 = vmatpush1.msra.mxu0 0.0
    %369 = vmatprep.subr.mxu0 0.0
    %370 = vmatpush1.msra.mxu0 0.0
    %371 = vmatprep.subr.mxu0 0.0
    %372 = vmatpush1.msra.mxu0 0.0
    %373 = vmatprep.subr.mxu0 0.0
    %374 = vmatpush1.msra.mxu0 0.0
    %375 = vmatprep.subr.mxu0 0.0
    %376 = vmatpush1.msra.mxu0 0.0
    %377 = vmatprep.subr.mxu0 0.0
    %378 = vmatpush1.msra.mxu0 0.0
    %379 = vmatprep.subr.mxu0 0.0
    %380 = vmatpush1.msra.mxu0 0.0
    %381 = vmatprep.subr.mxu0 0.0
    %382 = vmatpush1.msra.mxu0 0.0
    %383 = vmatprep.subr.mxu0 0.0
    %384 = vmatpush1.msra.mxu0 0.0
    %385 = vmatprep.subr.mxu0 0.0
    %386 = vmatpush1.msra.mxu0 0.0
    %387 = vmatprep.subr.mxu0 0.0
    %388 = vmatpush1.msra.mxu0 0.0
    %389 = vmatprep.subr.mxu0 0.0
    %390 = vmatpush1.msra.mxu0 0.0
    %391 = vmatprep.subr.mxu0 0.0
    %392 = vmatpush1.msra.mxu0 0.0
    %393 = vmatprep.subr.mxu0 0.0
    %394 = vmatpush1.msra.mxu0 0.0
    %395 = vmatprep.subr.mxu0 0.0
    %396 = vmatpush1.msra.mxu0 0.0
    %397 = vmatprep.mubr.f32.mxu0 0.0
    %398 = vmatmul.mubr.f32.gmra.mrb[0].mxu0 %v54
    %v399 = vpop.f32.mrb[0].mxu0
    %v400 = vadd.f32 %v331, %v399
    %v401 = vpop.f32.mrb[0].mxu0
    %402 = vmatprep.mubr.f32.mxu0 0.0
    %403 = vmatmul.mubr.f32.gmra.mrb[0].mxu0 %v55
    %v404 = vpop.f32.mrb[0].mxu0
    %v405 = vadd.f32 %v331, %v404
    %v406 = vpop.f32.mrb[0].mxu0
    %407 = vmatprep.mubr.f32.mxu0 0.0
    %408 = vmatmul.mubr.f32.gmra.mrb[0].mxu0 %v56
    %v409 = vpop.f32.mrb[0].mxu0
    %v410 = vadd.f32 %v331, %v409
    %v411 = vpop.f32.mrb[0].mxu0
    %412 = vmatprep.mubr.f32.mxu0 0.0
    %413 = vmatmul.mubr.f32.gmra.mrb[0].mxu0 %v57
    %v414 = vpop.f32.mrb[0].mxu0
    %v415 = vadd.f32 %v331, %v414
    %v416 = vpop.f32.mrb[0].mxu0
    %417 = vmatprep.mubr.f32.mxu0 0.0
    %418 = vmatmul.mubr.f32.gmra.mrb[0].mxu0 %v58
    %v419 = vpop.f32.mrb[0].mxu0
    %v420 = vadd.f32 %v331, %v419
    %v421 = vpop.f32.mrb[0].mxu0
    %422 = vmatprep.mubr.f32.mxu0 0.0
    %423 = vmatmul.mubr.f32.gmra.mrb[0].mxu0 %v59
    %v424 = vpop.f32.mrb[0].mxu0
    %v425 = vadd.f32 %v331, %v424
    %v426 = vpop.f32.mrb[0].mxu0
    %427 = vmatprep.mubr.f32.mxu0 0.0
    %428 = vmatmul.mubr.f32.gmra.mrb[0].mxu0 %v60
    %v429 = vpop.f32.mrb[0].mxu0
    %v430 = vadd.f32 %v331, %v429
    %v431 = vpop.f32.mrb[0].mxu0
    %432 = vmatprep.mubr.f32.mxu0 0.0
    %433 = vmatmul.mubr.f32.gmra.mrb[0].mxu0 %v61
    %v434 = vpop.f32.mrb[0].mxu0
    %v435 = vadd.f32 %v331, %v434
    %v436 = vpop.f32.mrb[0].mxu0
    %437 = vmatprep.mubr.f32.mxu0 0.0
    %438 = vmatmul.mubr.f32.gmra.mrb[0].mxu0 %v62
    %v439 = vpop.f32.mrb[0].mxu0
    %v440 = vadd.f32 %v331, %v439
    %v441 = vpop.f32.mrb[0].mxu0
    %442 = vmatprep.mubr.f32.mxu0 0.0
    %443 = vmatmul.mubr.f32.gmra.mrb[0].mxu0 %v63
    %v444 = vpop.f32.mrb[0].mxu0
    %v445 = vadd.f32 %v331, %v444
    %v446 = vpop.f32.mrb[0].mxu0
    %447 = vmatprep.mubr.f32.mxu0 0.0
    %448 = vmatmul.mubr.f32.gmra.mrb[0].mxu0 %v64
    %v449 = vpop.f32.mrb[0].mxu0
    %v450 = vadd.f32 %v331, %v449
    %v451 = vpop.f32.mrb[0].mxu0
    %452 = vmatprep.mubr.f32.mxu0 0.0
    %453 = vmatmul.mubr.f32.gmra.mrb[0].mxu0 %v65
    %v454 = vpop.f32.mrb[0].mxu0
    %v455 = vadd.f32 %v331, %v454
    %v456 = vpop.f32.mrb[0].mxu0
    %457 = vmatprep.mubr.f32.mxu0 0.0
    %458 = vmatmul.mubr.f32.gmra.mrb[0].mxu0 %v66
    %v459 = vpop.f32.mrb[0].mxu0
    %v460 = vadd.f32 %v331, %v459
    %v461 = vpop.f32.mrb[0].mxu0
    %462 = vmatprep.mubr.f32.mxu0 0.0
    %463 = vmatmul.mubr.f32.gmra.mrb[0].mxu0 %v67
    %v464 = vpop.f32.mrb[0].mxu0
    %v465 = vadd.f32 %v331, %v464
    %v466 = vpop.f32.mrb[0].mxu0
    %467 = vmatprep.mubr.f32.mxu0 0.0
    %468 = vmatmul.mubr.f32.gmra.mrb[0].mxu0 %v68
    %v469 = vpop.f32.mrb[0].mxu0
    %v470 = vadd.f32 %v331, %v469
    %v471 = vpop.f32.mrb[0].mxu0
    %472 = vmatprep.mubr.f32.mxu0 0.0
    %473 = vmatmul.mubr.f32.gmra.mrb[0].mxu0 %v69
    %v474 = vpop.f32.mrb[0].mxu0
    %v475 = vadd.f32 %v331, %v474
    %v476 = vpop.f32.mrb[0].mxu0
    %477 = vmatprep.mubr.f32.mxu0 0.0
    %478 = vmatmul.mubr.f32.gmra.mrb[0].mxu0 %v70
    %v479 = vpop.f32.mrb[0].mxu0
    %v480 = vadd.f32 %v331, %v479
    %v481 = vpop.f32.mrb[0].mxu0
    %482 = vmatprep.mubr.f32.mxu0 0.0
    %483 = vmatmul.mubr.f32.gmra.mrb[0].mxu0 %v71
    %v484 = vpop.f32.mrb[0].mxu0
    %v485 = vadd.f32 %v331, %v484
    %v486 = vpop.f32.mrb[0].mxu0
    %487 = vmatprep.mubr.f32.mxu0 0.0
    %488 = vmatmul.mubr.f32.gmra.mrb[0].mxu0 %v72
    %v489 = vpop.f32.mrb[0].mxu0
    %v490 = vadd.f32 %v331, %v489
    %v491 = vpop.f32.mrb[0].mxu0
    %492 = vmatprep.mubr.f32.mxu0 0.0
    %493 = vmatmul.mubr.f32.gmra.mrb[0].mxu0 %v73
    %v494 = vpop.f32.mrb[0].mxu0
    %v495 = vadd.f32 %v331, %v494
    %v496 = vpop.f32.mrb[0].mxu0
    %497 = vmatprep.mubr.f32.mxu0 0.0
    %498 = vmatmul.mubr.f32.gmra.mrb[0].mxu0 %v74
    %v499 = vpop.f32.mrb[0].mxu0
    %v500 = vadd.f32 %v331, %v499
    %v501 = vpop.f32.mrb[0].mxu0
    %502 = vmatprep.mubr.f32.mxu0 0.0
    %503 = vmatmul.mubr.f32.gmra.mrb[0].mxu0 %v75
    %v504 = vpop.f32.mrb[0].mxu0
    %v505 = vadd.f32 %v331, %v504
    %v506 = vpop.f32.mrb[0].mxu0
    %507 = vmatprep.mubr.f32.mxu0 0.0
    %508 = vmatmul.mubr.f32.gmra.mrb[0].mxu0 %v76
    %v509 = vpop.f32.mrb[0].mxu0
    %v510 = vadd.f32 %v331, %v509
    %v511 = vpop.f32.mrb[0].mxu0
    %512 = vmatprep.mubr.f32.mxu0 0.0
    %513 = vmatmul.mubr.f32.gmra.mrb[0].mxu0 %v77
    %v514 = vpop.f32.mrb[0].mxu0
    %v515 = vadd.f32 %v331, %v514
    %v516 = vpop.f32.mrb[0].mxu0
    %517 = vmatprep.mubr.f32.mxu0 0.0
    %518 = vmatmul.mubr.f32.gmra.mrb[0].mxu0 %v78
    %v519 = vpop.f32.mrb[0].mxu0
    %v520 = vadd.f32 %v331, %v519
    %v521 = vpop.f32.mrb[0].mxu0
    %522 = vmatprep.mubr.f32.mxu0 0.0
    %523 = vmatmul.mubr.f32.gmra.mrb[0].mxu0 %v79
    %v524 = vpop.f32.mrb[0].mxu0
    %v525 = vadd.f32 %v331, %v524
    %v526 = vpop.f32.mrb[0].mxu0
    %527 = vmatprep.mubr.f32.mxu0 0.0
    %528 = vmatmul.mubr.f32.gmra.mrb[0].mxu0 %v80
    %v529 = vpop.f32.mrb[0].mxu0
    %v530 = vadd.f32 %v331, %v529
    %v531 = vpop.f32.mrb[0].mxu0
    %532 = vmatprep.mubr.f32.mxu0 0.0
    %533 = vmatmul.mubr.f32.gmra.mrb[0].mxu0 %v81
    %v534 = vpop.f32.mrb[0].mxu0
    %v535 = vadd.f32 %v331, %v534
    %v536 = vpop.f32.mrb[0].mxu0
    %537 = vmatprep.mubr.f32.mxu0 0.0
    %538 = vmatmul.mubr.f32.gmra.mrb[0].mxu0 %v82
    %v539 = vpop.f32.mrb[0].mxu0
    %v540 = vadd.f32 %v331, %v539
    %v541 = vpop.f32.mrb[0].mxu0
    %542 = vmatprep.mubr.f32.mxu0 0.0
    %543 = vmatmul.mubr.f32.gmra.mrb[0].mxu0 %v83
    %v544 = vpop.f32.mrb[0].mxu0
    %v545 = vadd.f32 %v331, %v544
    %v546 = vpop.f32.mrb[0].mxu0
    %547 = vmatprep.mubr.f32.mxu0 0.0
    %548 = vmatmul.mubr.f32.gmra.mrb[0].mxu0 %v84
    %v549 = vpop.f32.mrb[0].mxu0
    %v550 = vadd.f32 %v331, %v549
    %v551 = vpop.f32.mrb[0].mxu0
    %552 = vmatprep.mubr.f32.mxu0 0.0
    %553 = vmatmul.mubr.f32.gmra.mrb[0].mxu0 %v85
    %v554 = vpop.f32.mrb[0].mxu0
    %v555 = vadd.f32 %v331, %v554
    %v556 = vpop.f32.mrb[0].mxu0
    %557 = vmatprep.mubr.f32.mxu0 0.0
    %558 = vmatmul.mubr.f32.gmra.mrb[0].mxu0 %v86
    %v559 = vpop.f32.mrb[0].mxu0
    %v560 = vadd.f32 %v331, %v559
    %v561 = vpop.f32.mrb[0].mxu0
    %562 = vmatprep.mubr.f32.mxu0 0.0
    %563 = vmatmul.mubr.f32.gmra.mrb[0].mxu0 %v87
    %v564 = vpop.f32.mrb[0].mxu0
    %v565 = vadd.f32 %v331, %v564
    %v566 = vpop.f32.mrb[0].mxu0
    %567 = vmatprep.mubr.f32.mxu0 0.0
    %568 = vmatmul.mubr.f32.gmra.mrb[0].mxu0 %v88
    %v569 = vpop.f32.mrb[0].mxu0
    %v570 = vadd.f32 %v331, %v569
    %v571 = vpop.f32.mrb[0].mxu0
    %572 = vmatprep.mubr.f32.mxu0 0.0
    %573 = vmatmul.mubr.f32.gmra.mrb[0].mxu0 %v89
    %v574 = vpop.f32.mrb[0].mxu0
    %v575 = vadd.f32 %v331, %v574
    %v576 = vpop.f32.mrb[0].mxu0
    %577 = vmatprep.mubr.f32.mxu0 0.0
    %578 = vmatmul.mubr.f32.gmra.mrb[0].mxu0 %v90
    %v579 = vpop.f32.mrb[0].mxu0
    %v580 = vadd.f32 %v331, %v579
    %v581 = vpop.f32.mrb[0].mxu0
    %582 = vmatprep.mubr.f32.mxu0 0.0
    %583 = vmatmul.mubr.f32.gmra.mrb[0].mxu0 %v91
    %v584 = vpop.f32.mrb[0].mxu0
    %v585 = vadd.f32 %v331, %v584
    %v586 = vpop.f32.mrb[0].mxu0
    %587 = vmatprep.mubr.f32.mxu0 0.0
    %588 = vmatmul.mubr.f32.gmra.mrb[0].mxu0 %v92
    %v589 = vpop.f32.mrb[0].mxu0
    %v590 = vadd.f32 %v331, %v589
    %v591 = vpop.f32.mrb[0].mxu0
    %592 = vmatprep.mubr.f32.mxu0 0.0
    %593 = vmatmul.mubr.f32.gmra.mrb[0].mxu0 %v93
    %v594 = vpop.f32.mrb[0].mxu0
    %v595 = vadd.f32 %v331, %v594
    %v596 = vpop.f32.mrb[0].mxu0
    %597 = vmatprep.mubr.f32.mxu0 0.0
    %598 = vmatmul.mubr.f32.gmra.mrb[0].mxu0 %v94
    %v599 = vpop.f32.mrb[0].mxu0
    %v600 = vadd.f32 %v331, %v599
    %v601 = vpop.f32.mrb[0].mxu0
    %602 = vmatprep.mubr.f32.mxu0 0.0
    %603 = vmatmul.mubr.f32.gmra.mrb[0].mxu0 %v95
    %v604 = vpop.f32.mrb[0].mxu0
    %v605 = vadd.f32 %v331, %v604
    %v606 = vpop.f32.mrb[0].mxu0
    %607 = vmatprep.mubr.f32.mxu0 0.0
    %608 = vmatmul.mubr.f32.gmra.mrb[0].mxu0 %v96
    %v609 = vpop.f32.mrb[0].mxu0
    %v610 = vadd.f32 %v331, %v609
    %v611 = vpop.f32.mrb[0].mxu0
    %612 = vmatprep.mubr.f32.mxu0 0.0
    %613 = vmatmul.mubr.f32.gmra.mrb[0].mxu0 %v97
    %v614 = vpop.f32.mrb[0].mxu0
    %v615 = vadd.f32 %v331, %v614
    %v616 = vpop.f32.mrb[0].mxu0
    %617 = vmatprep.mubr.f32.mxu0 0.0
    %618 = vmatmul.mubr.f32.gmra.mrb[0].mxu0 %v98
    %v619 = vpop.f32.mrb[0].mxu0
    %v620 = vadd.f32 %v331, %v619
    %v621 = vpop.f32.mrb[0].mxu0
    %622 = vmatprep.mubr.f32.mxu0 0.0
    %623 = vmatmul.mubr.f32.gmra.mrb[0].mxu0 %v99
    %v624 = vpop.f32.mrb[0].mxu0
    %v625 = vadd.f32 %v331, %v624
    %v626 = vpop.f32.mrb[0].mxu0
    %627 = vmatprep.mubr.f32.mxu0 0.0
    %628 = vmatmul.mubr.f32.gmra.mrb[0].mxu0 %v100
    %v629 = vpop.f32.mrb[0].mxu0
    %v630 = vadd.f32 %v331, %v629
    %v631 = vpop.f32.mrb[0].mxu0
    %632 = vmatprep.mubr.f32.mxu0 0.0
    %633 = vmatmul.mubr.f32.gmra.mrb[0].mxu0 %v101
    %v634 = vpop.f32.mrb[0].mxu0
    %v635 = vadd.f32 %v331, %v634
    %v636 = vpop.f32.mrb[0].mxu0
    %637 = vmatprep.mubr.f32.mxu0 0.0
    %638 = vmatmul.mubr.f32.gmra.mrb[0].mxu0 %v102
    %v639 = vpop.f32.mrb[0].mxu0
    %v640 = vadd.f32 %v331, %v639
    %v641 = vpop.f32.mrb[0].mxu0
    %642 = vmatprep.mubr.f32.mxu0 0.0
    %643 = vmatmul.mubr.f32.gmra.mrb[0].mxu0 %v103
    %v644 = vpop.f32.mrb[0].mxu0
    %v645 = vadd.f32 %v331, %v644
    %v646 = vpop.f32.mrb[0].mxu0
    %647 = vmatprep.mubr.f32.mxu0 0.0
    %648 = vmatmul.mubr.f32.gmra.mrb[0].mxu0 %v104
    %v649 = vpop.f32.mrb[0].mxu0
    %v650 = vadd.f32 %v331, %v649
    %v651 = vpop.f32.mrb[0].mxu0
    %652 = vmatprep.mubr.f32.mxu0 0.0
    %653 = vmatmul.mubr.f32.gmra.mrb[0].mxu0 %v105
    %v654 = vpop.f32.mrb[0].mxu0
    %v655 = vadd.f32 %v331, %v654
    %v656 = vpop.f32.mrb[0].mxu0
    %657 = vmatprep.mubr.f32.mxu0 0.0
    %658 = vmatmul.mubr.f32.gmra.mrb[0].mxu0 %v106
    %v659 = vpop.f32.mrb[0].mxu0
    %v660 = vadd.f32 %v331, %v659
    %v661 = vpop.f32.mrb[0].mxu0
    %662 = vmatprep.mubr.f32.mxu0 0.0
    %663 = vmatmul.mubr.f32.gmra.mrb[0].mxu0 %v107
    %v664 = vpop.f32.mrb[0].mxu0
    %v665 = vadd.f32 %v331, %v664
    %v666 = vpop.f32.mrb[0].mxu0
    %667 = vmatprep.mubr.f32.mxu0 0.0
    %668 = vmatmul.mubr.f32.gmra.mrb[0].mxu0 %v108
    %v669 = vpop.f32.mrb[0].mxu0
    %v670 = vadd.f32 %v331, %v669
    %v671 = vpop.f32.mrb[0].mxu0
    %672 = vmatprep.mubr.f32.mxu0 0.0
    %673 = vmatmul.mubr.f32.gmra.mrb[0].mxu0 %v109
    %v674 = vpop.f32.mrb[0].mxu0
    %v675 = vadd.f32 %v331, %v674
    %v676 = vpop.f32.mrb[0].mxu0
    %677 = vmatprep.mubr.f32.mxu0 0.0
    %678 = vmatmul.mubr.f32.gmra.mrb[0].mxu0 %v110
    %v679 = vpop.f32.mrb[0].mxu0
    %v680 = vadd.f32 %v331, %v679
    %v681 = vpop.f32.mrb[0].mxu0
    %682 = vmatprep.mubr.f32.mxu0 0.0
    %683 = vmatmul.mubr.f32.gmra.mrb[0].mxu0 %v111
    %v684 = vpop.f32.mrb[0].mxu0
    %v685 = vadd.f32 %v331, %v684
    %v686 = vpop.f32.mrb[0].mxu0
    %687 = vmatprep.mubr.f32.mxu0 0.0
    %688 = vmatmul.mubr.f32.gmra.mrb[0].mxu0 %v112
    %v689 = vpop.f32.mrb[0].mxu0
    %v690 = vadd.f32 %v331, %v689
    %v691 = vpop.f32.mrb[0].mxu0
    %692 = vmatprep.mubr.f32.mxu0 0.0
    %693 = vmatmul.mubr.f32.gmra.mrb[0].mxu0 %v113
    %v694 = vpop.f32.mrb[0].mxu0
    %v695 = vadd.f32 %v331, %v694
    %v696 = vpop.f32.mrb[0].mxu0
    %697 = vmatprep.mubr.f32.mxu0 0.0
    %698 = vmatmul.mubr.f32.gmra.mrb[0].mxu0 %v114
    %v699 = vpop.f32.mrb[0].mxu0
    %v700 = vadd.f32 %v331, %v699
    %v701 = vpop.f32.mrb[0].mxu0
    %702 = vmatprep.mubr.f32.mxu0 0.0
    %703 = vmatmul.mubr.f32.gmra.mrb[0].mxu0 %v115
    %v704 = vpop.f32.mrb[0].mxu0
    %v705 = vadd.f32 %v331, %v704
    %v706 = vpop.f32.mrb[0].mxu0
    %707 = vmatprep.mubr.f32.mxu0 0.0
    %708 = vmatmul.mubr.f32.gmra.mrb[0].mxu0 %v116
    %v709 = vpop.f32.mrb[0].mxu0
    %v710 = vadd.f32 %v331, %v709
    %v711 = vpop.f32.mrb[0].mxu0
    %712 = vmatprep.mubr.f32.mxu0 0.0
    %713 = vmatmul.mubr.f32.gmra.mrb[0].mxu0 %v117
    %v714 = vpop.f32.mrb[0].mxu0
    %v715 = vadd.f32 %v331, %v714
    %v716 = vpop.f32.mrb[0].mxu0
    %717 = vmatprep.mubr.f32.mxu0 0.0
    %718 = vmatmul.mubr.f32.gmra.mrb[0].mxu0 %v118
    %v719 = vpop.f32.mrb[0].mxu0
    %v720 = vadd.f32 %v331, %v719
    %v721 = vpop.f32.mrb[0].mxu0
    %722 = vmatprep.mubr.f32.mxu0 0.0
    %723 = vmatmul.mubr.f32.gmra.mrb[0].mxu0 %v119
    %v724 = vpop.f32.mrb[0].mxu0
    %v725 = vadd.f32 %v331, %v724
    %v726 = vpop.f32.mrb[0].mxu0
    %727 = vmatprep.mubr.f32.mxu0 0.0
    %728 = vmatmul.mubr.f32.gmra.mrb[0].mxu0 %v120
    %v729 = vpop.f32.mrb[0].mxu0
    %v730 = vadd.f32 %v331, %v729
    %v731 = vpop.f32.mrb[0].mxu0
    %732 = vmatprep.mubr.f32.mxu0 0.0
    %733 = vmatmul.mubr.f32.gmra.mrb[0].mxu0 %v121
    %v734 = vpop.f32.mrb[0].mxu0
    %v735 = vadd.f32 %v331, %v734
    %v736 = vpop.f32.mrb[0].mxu0
    %737 = vmatprep.mubr.f32.mxu0 0.0
    %738 = vmatmul.mubr.f32.gmra.mrb[0].mxu0 %v122
    %v739 = vpop.f32.mrb[0].mxu0
    %v740 = vadd.f32 %v331, %v739
    %v741 = vpop.f32.mrb[0].mxu0
    %742 = vmatprep.mubr.f32.mxu0 0.0
    %743 = vmatmul.mubr.f32.gmra.mrb[0].mxu0 %v123
    %v744 = vpop.f32.mrb[0].mxu0
    %v745 = vadd.f32 %v331, %v744
    %v746 = vpop.f32.mrb[0].mxu0
    %747 = vmatprep.mubr.f32.mxu0 0.0
    %748 = vmatmul.mubr.f32.gmra.mrb[0].mxu0 %v124
    %v749 = vpop.f32.mrb[0].mxu0
    %v750 = vadd.f32 %v331, %v749
    %v751 = vpop.f32.mrb[0].mxu0
    %752 = vmatprep.mubr.f32.mxu0 0.0
    %753 = vmatmul.mubr.f32.gmra.mrb[0].mxu0 %v125
    %v754 = vpop.f32.mrb[0].mxu0
    %v755 = vadd.f32 %v331, %v754
    %v756 = vpop.f32.mrb[0].mxu0
    %757 = vmatprep.mubr.f32.mxu0 0.0
    %758 = vmatmul.mubr.f32.gmra.mrb[0].mxu0 %v126
    %v759 = vpop.f32.mrb[0].mxu0
    %v760 = vadd.f32 %v331, %v759
    %v761 = vpop.f32.mrb[0].mxu0
    %762 = vmatprep.mubr.f32.mxu0 0.0
    %763 = vmatmul.mubr.f32.gmra.mrb[0].mxu0 %v127
    %v764 = vpop.f32.mrb[0].mxu0
    %v765 = vadd.f32 %v331, %v764
    %v766 = vpop.f32.mrb[0].mxu0
    %767 = vmatprep.mubr.f32.mxu0 0.0
    %768 = vmatmul.mubr.f32.gmra.mrb[0].mxu0 %v128
    %v769 = vpop.f32.mrb[0].mxu0
    %v770 = vadd.f32 %v331, %v769
    %v771 = vpop.f32.mrb[0].mxu0
    %772 = vmatprep.mubr.f32.mxu0 0.0
    %773 = vmatmul.mubr.f32.gmra.mrb[0].mxu0 %v129
    %v774 = vpop.f32.mrb[0].mxu0
    %v775 = vadd.f32 %v331, %v774
    %v776 = vpop.f32.mrb[0].mxu0
    %777 = vmatprep.mubr.f32.mxu0 0.0
    %778 = vmatmul.mubr.f32.gmra.mrb[0].mxu0 %v130
    %v779 = vpop.f32.mrb[0].mxu0
    %v780 = vadd.f32 %v331, %v779
    %v781 = vpop.f32.mrb[0].mxu0
    %782 = vmatprep.mubr.f32.mxu0 0.0
    %783 = vmatmul.mubr.f32.gmra.mrb[0].mxu0 %v131
    %v784 = vpop.f32.mrb[0].mxu0
    %v785 = vadd.f32 %v331, %v784
    %v786 = vpop.f32.mrb[0].mxu0
    %787 = vmatprep.mubr.f32.mxu0 0.0
    %788 = vmatmul.mubr.f32.gmra.mrb[0].mxu0 %v132
    %v789 = vpop.f32.mrb[0].mxu0
    %v790 = vadd.f32 %v331, %v789
    %v791 = vpop.f32.mrb[0].mxu0
    %792 = vmatprep.mubr.f32.mxu0 0.0
    %793 = vmatmul.mubr.f32.gmra.mrb[0].mxu0 %v133
    %v794 = vpop.f32.mrb[0].mxu0
    %v795 = vadd.f32 %v331, %v794
    %v796 = vpop.f32.mrb[0].mxu0
    %797 = vmatprep.mubr.f32.mxu0 0.0
    %798 = vmatmul.mubr.f32.gmra.mrb[0].mxu0 %v134
    %v799 = vpop.f32.mrb[0].mxu0
    %v800 = vadd.f32 %v331, %v799
    %v801 = vpop.f32.mrb[0].mxu0
    %802 = vmatprep.mubr.f32.mxu0 0.0
    %803 = vmatmul.mubr.f32.gmra.mrb[0].mxu0 %v135
    %v804 = vpop.f32.mrb[0].mxu0
    %v805 = vadd.f32 %v331, %v804
    %v806 = vpop.f32.mrb[0].mxu0
    %807 = vmatprep.mubr.f32.mxu0 0.0
    %808 = vmatmul.mubr.f32.gmra.mrb[0].mxu0 %v136
    %v809 = vpop.f32.mrb[0].mxu0
    %v810 = vadd.f32 %v331, %v809
    %v811 = vpop.f32.mrb[0].mxu0
    %812 = vmatprep.mubr.f32.mxu0 0.0
    %813 = vmatmul.mubr.f32.gmra.mrb[0].mxu0 %v137
    %v814 = vpop.f32.mrb[0].mxu0
    %v815 = vadd.f32 %v331, %v814
    %v816 = vpop.f32.mrb[0].mxu0
    %817 = vmatprep.mubr.f32.mxu0 0.0
    %818 = vmatmul.mubr.f32.gmra.mrb[0].mxu0 %v138
    %v819 = vpop.f32.mrb[0].mxu0
    %v820 = vadd.f32 %v331, %v819
    %v821 = vpop.f32.mrb[0].mxu0
    %822 = vmatprep.mubr.f32.mxu0 0.0
    %823 = vmatmul.mubr.f32.gmra.mrb[0].mxu0 %v139
    %v824 = vpop.f32.mrb[0].mxu0
    %v825 = vadd.f32 %v331, %v824
    %v826 = vpop.f32.mrb[0].mxu0
    %827 = vmatprep.mubr.f32.mxu0 0.0
    %828 = vmatmul.mubr.f32.gmra.mrb[0].mxu0 %v140
    %v829 = vpop.f32.mrb[0].mxu0
    %v830 = vadd.f32 %v331, %v829
    %v831 = vpop.f32.mrb[0].mxu0
    %832 = vmatprep.mubr.f32.mxu0 0.0
    %833 = vmatmul.mubr.f32.gmra.mrb[0].mxu0 %v141
    %v834 = vpop.f32.mrb[0].mxu0
    %v835 = vadd.f32 %v331, %v834
    %v836 = vpop.f32.mrb[0].mxu0
    %837 = vmatprep.mubr.f32.mxu0 0.0
    %838 = vmatmul.mubr.f32.gmra.mrb[0].mxu0 %v142
    %v839 = vpop.f32.mrb[0].mxu0
    %v840 = vadd.f32 %v331, %v839
    %v841 = vpop.f32.mrb[0].mxu0
    %842 = vmatprep.mubr.f32.mxu0 0.0
    %843 = vmatmul.mubr.f32.gmra.mrb[0].mxu0 %v143
    %v844 = vpop.f32.mrb[0].mxu0
    %v845 = vadd.f32 %v331, %v844
    %v846 = vpop.f32.mrb[0].mxu0
    %847 = vmatprep.mubr.f32.mxu0 0.0
    %848 = vmatmul.mubr.f32.gmra.mrb[0].mxu0 %v144
    %v849 = vpop.f32.mrb[0].mxu0
    %v850 = vadd.f32 %v331, %v849
    %v851 = vpop.f32.mrb[0].mxu0
    %852 = vmatprep.mubr.f32.mxu0 0.0
    %853 = vmatmul.mubr.f32.gmra.mrb[0].mxu0 %v145
    %v854 = vpop.f32.mrb[0].mxu0
    %v855 = vadd.f32 %v331, %v854
    %v856 = vpop.f32.mrb[0].mxu0
    %857 = vmatprep.mubr.f32.mxu0 0.0
    %858 = vmatmul.mubr.f32.gmra.mrb[0].mxu0 %v146
    %v859 = vpop.f32.mrb[0].mxu0
    %v860 = vadd.f32 %v331, %v859
    %v861 = vpop.f32.mrb[0].mxu0
    %862 = vmatprep.mubr.f32.mxu0 0.0
    %863 = vmatmul.mubr.f32.gmra.mrb[0].mxu0 %v147
    %v864 = vpop.f32.mrb[0].mxu0
    %v865 = vadd.f32 %v331, %v864
    %v866 = vpop.f32.mrb[0].mxu0
    %867 = vmatprep.mubr.f32.mxu0 0.0
    %868 = vmatmul.mubr.f32.gmra.mrb[0].mxu0 %v148
    %v869 = vpop.f32.mrb[0].mxu0
    %v870 = vadd.f32 %v331, %v869
    %v871 = vpop.f32.mrb[0].mxu0
    %872 = vmatprep.mubr.f32.mxu0 0.0
    %873 = vmatmul.mubr.f32.gmra.mrb[0].mxu0 %v149
    %v874 = vpop.f32.mrb[0].mxu0
    %v875 = vadd.f32 %v331, %v874
    %v876 = vpop.f32.mrb[0].mxu0
    %877 = vmatprep.mubr.f32.mxu0 0.0
    %878 = vmatmul.mubr.f32.gmra.mrb[0].mxu0 %v150
    %v879 = vpop.f32.mrb[0].mxu0
    %v880 = vadd.f32 %v331, %v879
    %v881 = vpop.f32.mrb[0].mxu0
    %882 = vmatprep.mubr.f32.mxu0 0.0
    %883 = vmatmul.mubr.f32.gmra.mrb[0].mxu0 %v151
    %v884 = vpop.f32.mrb[0].mxu0
    %v885 = vadd.f32 %v331, %v884
    %v886 = vpop.f32.mrb[0].mxu0
    %887 = vmatprep.mubr.f32.mxu0 0.0
    %888 = vmatmul.mubr.f32.gmra.mrb[0].mxu0 %v152
    %v889 = vpop.f32.mrb[0].mxu0
    %v890 = vadd.f32 %v331, %v889
    %v891 = vpop.f32.mrb[0].mxu0
    %892 = vmatprep.mubr.f32.mxu0 0.0
    %893 = vmatmul.mubr.f32.gmra.mrb[0].mxu0 %v153
    %v894 = vpop.f32.mrb[0].mxu0
    %v895 = vadd.f32 %v331, %v894
    %v896 = vpop.f32.mrb[0].mxu0
    %897 = vmatprep.mubr.f32.mxu0 0.0
    %898 = vmatmul.mubr.f32.gmra.mrb[0].mxu0 %v154
    %v899 = vpop.f32.mrb[0].mxu0
    %v900 = vadd.f32 %v331, %v899
    %v901 = vpop.f32.mrb[0].mxu0
    %902 = vmatprep.mubr.f32.mxu0 0.0
    %903 = vmatmul.mubr.f32.gmra.mrb[0].mxu0 %v155
    %v904 = vpop.f32.mrb[0].mxu0
    %v905 = vadd.f32 %v331, %v904
    %v906 = vpop.f32.mrb[0].mxu0
    %907 = vmatprep.mubr.f32.mxu0 0.0
    %908 = vmatmul.mubr.f32.gmra.mrb[0].mxu0 %v156
    %v909 = vpop.f32.mrb[0].mxu0
    %v910 = vadd.f32 %v331, %v909
    %v911 = vpop.f32.mrb[0].mxu0
    %912 = vmatprep.mubr.f32.mxu0 0.0
    %913 = vmatmul.mubr.f32.gmra.mrb[0].mxu0 %v157
    %v914 = vpop.f32.mrb[0].mxu0
    %v915 = vadd.f32 %v331, %v914
    %v916 = vpop.f32.mrb[0].mxu0
    %917 = vmatprep.mubr.f32.mxu0 0.0
    %918 = vmatmul.mubr.f32.gmra.mrb[0].mxu0 %v158
    %v919 = vpop.f32.mrb[0].mxu0
    %v920 = vadd.f32 %v331, %v919
    %v921 = vpop.f32.mrb[0].mxu0
    %922 = vmatprep.mubr.f32.mxu0 0.0
    %923 = vmatmul.mubr.f32.gmra.mrb[0].mxu0 %v159
    %v924 = vpop.f32.mrb[0].mxu0
    %v925 = vadd.f32 %v331, %v924
    %v926 = vpop.f32.mrb[0].mxu0
    %927 = vmatprep.mubr.f32.mxu0 0.0
    %928 = vmatmul.mubr.f32.gmra.mrb[0].mxu0 %v160
    %v929 = vpop.f32.mrb[0].mxu0
    %v930 = vadd.f32 %v331, %v929
    %v931 = vpop.f32.mrb[0].mxu0
    %932 = vmatprep.mubr.f32.mxu0 0.0
    %933 = vmatmul.mubr.f32.gmra.mrb[0].mxu0 %v161
    %v934 = vpop.f32.mrb[0].mxu0
    %v935 = vadd.f32 %v331, %v934
    %v936 = vpop.f32.mrb[0].mxu0
    %937 = vmatprep.mubr.f32.mxu0 0.0
    %938 = vmatmul.mubr.f32.gmra.mrb[0].mxu0 %v162
    %v939 = vpop.f32.mrb[0].mxu0
    %v940 = vadd.f32 %v331, %v939
    %v941 = vpop.f32.mrb[0].mxu0
    %942 = vmatprep.mubr.f32.mxu0 0.0
    %943 = vmatmul.mubr.f32.gmra.mrb[0].mxu0 %v163
    %v944 = vpop.f32.mrb[0].mxu0
    %v945 = vadd.f32 %v331, %v944
    %v946 = vpop.f32.mrb[0].mxu0
    %947 = vmatprep.mubr.f32.mxu0 0.0
    %948 = vmatmul.mubr.f32.gmra.mrb[0].mxu0 %v164
    %v949 = vpop.f32.mrb[0].mxu0
    %v950 = vadd.f32 %v331, %v949
    %v951 = vpop.f32.mrb[0].mxu0
    %952 = vmatprep.mubr.f32.mxu0 0.0
    %953 = vmatmul.mubr.f32.gmra.mrb[0].mxu0 %v165
    %v954 = vpop.f32.mrb[0].mxu0
    %v955 = vadd.f32 %v331, %v954
    %v956 = vpop.f32.mrb[0].mxu0
    %957 = vmatprep.mubr.f32.mxu0 0.0
    %958 = vmatmul.mubr.f32.gmra.mrb[0].mxu0 %v166
    %v959 = vpop.f32.mrb[0].mxu0
    %v960 = vadd.f32 %v331, %v959
    %v961 = vpop.f32.mrb[0].mxu0
    %962 = vmatprep.mubr.f32.mxu0 0.0
    %963 = vmatmul.mubr.f32.gmra.mrb[0].mxu0 %v167
    %v964 = vpop.f32.mrb[0].mxu0
    %v965 = vadd.f32 %v331, %v964
    %v966 = vpop.f32.mrb[0].mxu0
    %967 = vmatprep.mubr.f32.mxu0 0.0
    %968 = vmatmul.mubr.f32.gmra.mrb[0].mxu0 %v168
    %v969 = vpop.f32.mrb[0].mxu0
    %v970 = vadd.f32 %v331, %v969
    %v971 = vpop.f32.mrb[0].mxu0
    %972 = vmatprep.mubr.f32.mxu0 0.0
    %973 = vmatmul.mubr.f32.gmra.mrb[0].mxu0 %v169
    %v974 = vpop.f32.mrb[0].mxu0
    %v975 = vadd.f32 %v331, %v974
    %v976 = vpop.f32.mrb[0].mxu0
    %977 = vmatprep.mubr.f32.mxu0 0.0
    %978 = vmatmul.mubr.f32.gmra.mrb[0].mxu0 %v170
    %v979 = vpop.f32.mrb[0].mxu0
    %v980 = vadd.f32 %v331, %v979
    %v981 = vpop.f32.mrb[0].mxu0
    %982 = vmatprep.mubr.f32.mxu0 0.0
    %983 = vmatmul.mubr.f32.gmra.mrb[0].mxu0 %v171
    %v984 = vpop.f32.mrb[0].mxu0
    %v985 = vadd.f32 %v331, %v984
    %v986 = vpop.f32.mrb[0].mxu0
    %987 = vmatprep.mubr.f32.mxu0 0.0
    %988 = vmatmul.mubr.f32.gmra.mrb[0].mxu0 %v172
    %v989 = vpop.f32.mrb[0].mxu0
    %v990 = vadd.f32 %v331, %v989
    %v991 = vpop.f32.mrb[0].mxu0
    %992 = vmatprep.mubr.f32.mxu0 0.0
    %993 = vmatmul.mubr.f32.gmra.mrb[0].mxu0 %v173
    %v994 = vpop.f32.mrb[0].mxu0
    %v995 = vadd.f32 %v331, %v994
    %v996 = vpop.f32.mrb[0].mxu0
    %997 = vmatprep.mubr.f32.mxu0 0.0
    %998 = vmatmul.mubr.f32.gmra.mrb[0].mxu0 %v174
    %v999 = vpop.f32.mrb[0].mxu0
    %v1000 = vadd.f32 %v331, %v999
    %v1001 = vpop.f32.mrb[0].mxu0
    %1002 = vmatprep.mubr.f32.mxu0 0.0
    %1003 = vmatmul.mubr.f32.gmra.mrb[0].mxu0 %v175
    %v1004 = vpop.f32.mrb[0].mxu0
    %v1005 = vadd.f32 %v331, %v1004
    %v1006 = vpop.f32.mrb[0].mxu0
    %1007 = vmatprep.mubr.f32.mxu0 0.0
    %1008 = vmatmul.mubr.f32.gmra.mrb[0].mxu0 %v176
    %v1009 = vpop.f32.mrb[0].mxu0
    %v1010 = vadd.f32 %v331, %v1009
    %v1011 = vpop.f32.mrb[0].mxu0
    %1012 = vmatprep.mubr.f32.mxu0 0.0
    %1013 = vmatmul.mubr.f32.gmra.mrb[0].mxu0 %v177
    %v1014 = vpop.f32.mrb[0].mxu0
    %v1015 = vadd.f32 %v331, %v1014
    %v1016 = vpop.f32.mrb[0].mxu0
    %1017 = vmatprep.mubr.f32.mxu0 0.0
    %1018 = vmatmul.mubr.f32.gmra.mrb[0].mxu0 %v178
    %v1019 = vpop.f32.mrb[0].mxu0
    %v1020 = vadd.f32 %v331, %v1019
    %v1021 = vpop.f32.mrb[0].mxu0
    %1022 = vmatprep.mubr.f32.mxu0 0.0
    %1023 = vmatmul.mubr.f32.gmra.mrb[0].mxu0 %v179
    %v1024 = vpop.f32.mrb[0].mxu0
    %v1025 = vadd.f32 %v331, %v1024
    %v1026 = vpop.f32.mrb[0].mxu0
    %1027 = vmatprep.mubr.f32.mxu0 0.0
    %1028 = vmatmul.mubr.f32.gmra.mrb[0].mxu0 %v180
    %v1029 = vpop.f32.mrb[0].mxu0
    %v1030 = vadd.f32 %v331, %v1029
    %v1031 = vpop.f32.mrb[0].mxu0
    %1032 = vmatprep.mubr.f32.mxu0 0.0
    %1033 = vmatmul.mubr.f32.gmra.mrb[0].mxu0 %v181
    %v1034 = vpop.f32.mrb[0].mxu0
    %v1035 = vadd.f32 %v331, %v1034
    %v1036 = vpop.f32.mrb[0].mxu0
    %1037 = vmatprep.mubr.f32.mxu0 0.0
    %1038 = vmatmul.mubr.f32.gmra.mrb[0].mxu0 %v182
    %v1039 = vpop.f32.mrb[0].mxu0
    %v1040 = vadd.f32 %v331, %v1039
    %v1041 = vpop.f32.mrb[0].mxu0
    %1042 = vmatprep.mubr.f32.mxu0 0.0
    %1043 = vmatmul.mubr.f32.gmra.mrb[0].mxu0 %v183
    %v1044 = vpop.f32.mrb[0].mxu0
    %v1045 = vadd.f32 %v331, %v1044
    %v1046 = vpop.f32.mrb[0].mxu0
    %1047 = vmatprep.mubr.f32.mxu0 0.0
    %1048 = vmatmul.mubr.f32.gmra.mrb[0].mxu0 %v184
    %v1049 = vpop.f32.mrb[0].mxu0
    %v1050 = vadd.f32 %v331, %v1049
    %v1051 = vpop.f32.mrb[0].mxu0
    %1052 = vmatprep.mubr.f32.mxu0 0.0
    %1053 = vmatmul.mubr.f32.gmra.mrb[0].mxu0 %v185
    %v1054 = vpop.f32.mrb[0].mxu0
    %v1055 = vadd.f32 %v331, %v1054
    %v1056 = vpop.f32.mrb[0].mxu0
    %1057 = vmatprep.mubr.f32.mxu0 0.0
    %1058 = vmatmul.mubr.f32.gmra.mrb[0].mxu0 %v186
    %v1059 = vpop.f32.mrb[0].mxu0
    %v1060 = vadd.f32 %v331, %v1059
    %v1061 = vpop.f32.mrb[0].mxu0
    %1062 = vmatprep.mubr.f32.mxu0 0.0
    %1063 = vmatmul.mubr.f32.gmra.mrb[0].mxu0 %v187
    %v1064 = vpop.f32.mrb[0].mxu0
    %v1065 = vadd.f32 %v331, %v1064
    %v1066 = vpop.f32.mrb[0].mxu0
    %1067 = vmatprep.mubr.f32.mxu0 0.0
    %1068 = vmatmul.mubr.f32.gmra.mrb[0].mxu0 %v188
    %v1069 = vpop.f32.mrb[0].mxu0
    %v1070 = vadd.f32 %v331, %v1069
    %v1071 = vpop.f32.mrb[0].mxu0
    %1072 = vmatprep.mubr.f32.mxu0 0.0
    %1073 = vmatmul.mubr.f32.gmra.mrb[0].mxu0 %v189
    %v1074 = vpop.f32.mrb[0].mxu0
    %v1075 = vadd.f32 %v331, %v1074
    %v1076 = vpop.f32.mrb[0].mxu0
    %1077 = vmatprep.mubr.f32.mxu0 0.0
    %1078 = vmatmul.mubr.f32.gmra.mrb[0].mxu0 %v190
    %v1079 = vpop.f32.mrb[0].mxu0
    %v1080 = vadd.f32 %v331, %v1079
    %v1081 = vpop.f32.mrb[0].mxu0
    %1082 = vmatprep.mubr.f32.mxu0 0.0
    %1083 = vmatmul.mubr.f32.gmra.mrb[0].mxu0 %v191
    %v1084 = vpop.f32.mrb[0].mxu0
    %v1085 = vadd.f32 %v331, %v1084
    %v1086 = vpop.f32.mrb[0].mxu0
    %1087 = vmatprep.mubr.f32.mxu0 0.0
    %1088 = vmatmul.mubr.f32.gmra.mrb[0].mxu0 %v192
    %v1089 = vpop.f32.mrb[0].mxu0
    %v1090 = vadd.f32 %v331, %v1089
    %v1091 = vpop.f32.mrb[0].mxu0
    %1092 = vmatprep.mubr.f32.mxu0 0.0
    %1093 = vmatmul.mubr.f32.gmra.mrb[0].mxu0 %v193
    %v1094 = vpop.f32.mrb[0].mxu0
    %v1095 = vadd.f32 %v331, %v1094
    %v1096 = vpop.f32.mrb[0].mxu0
    %1097 = vmatprep.mubr.f32.mxu0 0.0
    %1098 = vmatmul.mubr.f32.gmra.mrb[0].mxu0 %v194
    %v1099 = vpop.f32.mrb[0].mxu0
    %v1100 = vadd.f32 %v331, %v1099
    %v1101 = vpop.f32.mrb[0].mxu0
    %1102 = vmatprep.mubr.f32.mxu0 0.0
    %1103 = vmatmul.mubr.f32.gmra.mrb[0].mxu0 %v195
    %v1104 = vpop.f32.mrb[0].mxu0
    %v1105 = vadd.f32 %v331, %v1104
    %v1106 = vpop.f32.mrb[0].mxu0
    %1107 = vmatprep.mubr.f32.mxu0 0.0
    %1108 = vmatmul.mubr.f32.gmra.mrb[0].mxu0 %v196
    %v1109 = vpop.f32.mrb[0].mxu0
    %v1110 = vadd.f32 %v331, %v1109
    %v1111 = vpop.f32.mrb[0].mxu0
    %1112 = vmatprep.mubr.f32.mxu0 0.0
    %1113 = vmatmul.mubr.f32.gmra.mrb[0].mxu0 %v197
    %v1114 = vpop.f32.mrb[0].mxu0
    %v1115 = vadd.f32 %v331, %v1114
    %v1116 = vpop.f32.mrb[0].mxu0
    %1117 = vmatprep.mubr.f32.mxu0 0.0
    %1118 = vmatmul.mubr.f32.gmra.mrb[0].mxu0 %v198
    %v1119 = vpop.f32.mrb[0].mxu0
    %v1120 = vadd.f32 %v331, %v1119
    %v1121 = vpop.f32.mrb[0].mxu0
    %1122 = vmatprep.mubr.f32.mxu0 0.0
    %1123 = vmatmul.mubr.f32.gmra.mrb[0].mxu0 %v199
    %v1124 = vpop.f32.mrb[0].mxu0
    %v1125 = vadd.f32 %v331, %v1124
    %v1126 = vpop.f32.mrb[0].mxu0
    %1127 = vmatprep.mubr.f32.mxu0 0.0
    %1128 = vmatmul.mubr.f32.gmra.mrb[0].mxu0 %v200
    %v1129 = vpop.f32.mrb[0].mxu0
    %v1130 = vadd.f32 %v331, %v1129
    %v1131 = vpop.f32.mrb[0].mxu0
    %1132 = vmatprep.mubr.f32.mxu0 0.0
    %1133 = vmatmul.mubr.f32.gmra.mrb[0].mxu0 %v201
    %v1134 = vpop.f32.mrb[0].mxu0
    %v1135 = vadd.f32 %v331, %v1134
    %v1136 = vpop.f32.mrb[0].mxu0
    %1137 = vmatprep.mubr.f32.mxu0 0.0
    %1138 = vmatmul.mubr.f32.gmra.mrb[0].mxu0 %v202
    %v1139 = vpop.f32.mrb[0].mxu0
    %v1140 = vadd.f32 %v331, %v1139
    %v1141 = vpop.f32.mrb[0].mxu0
    %1142 = vmatprep.mubr.f32.mxu0 0.0
    %1143 = vmatmul.mubr.f32.gmra.mrb[0].mxu0 %v203
    %v1144 = vpop.f32.mrb[0].mxu0
    %v1145 = vadd.f32 %v331, %v1144
    %v1146 = vpop.f32.mrb[0].mxu0
    %1147 = vmatprep.mubr.f32.mxu0 0.0
    %1148 = vmatmul.mubr.f32.gmra.mrb[0].mxu0 %v204
    %v1149 = vpop.f32.mrb[0].mxu0
    %v1150 = vadd.f32 %v331, %v1149
    %v1151 = vpop.f32.mrb[0].mxu0
    %1152 = vmatprep.mubr.f32.mxu0 0.0
    %1153 = vmatmul.mubr.f32.gmra.mrb[0].mxu0 %v205
    %v1154 = vpop.f32.mrb[0].mxu0
    %v1155 = vadd.f32 %v331, %v1154
    %v1156 = vpop.f32.mrb[0].mxu0
    %1157 = vmatprep.mubr.f32.mxu0 0.0
    %1158 = vmatmul.mubr.f32.gmra.mrb[0].mxu0 %v206
    %v1159 = vpop.f32.mrb[0].mxu0
    %v1160 = vadd.f32 %v331, %v1159
    %v1161 = vpop.f32.mrb[0].mxu0
    %1162 = vmatprep.mubr.f32.mxu0 0.0
    %1163 = vmatmul.mubr.f32.gmra.mrb[0].mxu0 %v207
    %v1164 = vpop.f32.mrb[0].mxu0
    %v1165 = vadd.f32 %v331, %v1164
    %v1166 = vpop.f32.mrb[0].mxu0
    %1167 = vmatprep.mubr.f32.mxu0 0.0
    %1168 = vmatmul.mubr.f32.gmra.mrb[0].mxu0 %v208
    %v1169 = vpop.f32.mrb[0].mxu0
    %v1170 = vadd.f32 %v331, %v1169
    %v1171 = vpop.f32.mrb[0].mxu0
    %1172 = vmatprep.mubr.f32.mxu0 0.0
    %1173 = vmatmul.mubr.f32.gmra.mrb[0].mxu0 %v209
    %v1174 = vpop.f32.mrb[0].mxu0
    %v1175 = vadd.f32 %v331, %v1174
    %v1176 = vpop.f32.mrb[0].mxu0
    %1177 = vmatprep.mubr.f32.mxu0 0.0
    %1178 = vmatmul.mubr.f32.gmra.mrb[0].mxu0 %v210
    %v1179 = vpop.f32.mrb[0].mxu0
    %v1180 = vadd.f32 %v331, %v1179
    %v1181 = vpop.f32.mrb[0].mxu0
    %1182 = vmatprep.mubr.f32.mxu0 0.0
    %1183 = vmatmul.mubr.f32.gmra.mrb[0].mxu0 %v211
    %v1184 = vpop.f32.mrb[0].mxu0
    %v1185 = vadd.f32 %v331, %v1184
    %v1186 = vpop.f32.mrb[0].mxu0
    %1187 = vmatprep.mubr.f32.mxu0 0.0
    %1188 = vmatmul.mubr.f32.gmra.mrb[0].mxu0 %v212
    %v1189 = vpop.f32.mrb[0].mxu0
    %v1190 = vadd.f32 %v331, %v1189
    %v1191 = vpop.f32.mrb[0].mxu0
    %1192 = vmatprep.mubr.f32.mxu0 0.0
    %1193 = vmatmul.mubr.f32.gmra.mrb[0].mxu0 %v213
    %v1194 = vpop.f32.mrb[0].mxu0
    %v1195 = vadd.f32 %v331, %v1194
    %v1196 = vpop.f32.mrb[0].mxu0
    %1197 = vmatprep.mubr.f32.mxu0 0.0
    %1198 = vmatmul.mubr.f32.gmra.mrb[0].mxu0 %v214
    %v1199 = vpop.f32.mrb[0].mxu0
    %v1200 = vadd.f32 %v331, %v1199
    %v1201 = vpop.f32.mrb[0].mxu0
    %1202 = vmatprep.mubr.f32.mxu0 0.0
    %1203 = vmatmul.mubr.f32.gmra.mrb[0].mxu0 %v215
    %v1204 = vpop.f32.mrb[0].mxu0
    %v1205 = vadd.f32 %v331, %v1204
    %v1206 = vpop.f32.mrb[0].mxu0
    %1207 = vmatprep.mubr.f32.mxu0 0.0
    %1208 = vmatmul.mubr.f32.gmra.mrb[0].mxu0 %v216
    %v1209 = vpop.f32.mrb[0].mxu0
    %v1210 = vadd.f32 %v331, %v1209
    %v1211 = vpop.f32.mrb[0].mxu0
    %1212 = vmatprep.mubr.f32.mxu0 0.0
    %1213 = vmatmul.mubr.f32.gmra.mrb[0].mxu0 %v217
    %v1214 = vpop.f32.mrb[0].mxu0
    %v1215 = vadd.f32 %v331, %v1214
    %v1216 = vpop.f32.mrb[0].mxu0
    %1217 = vmatprep.mubr.f32.mxu0 0.0
    %1218 = vmatmul.mubr.f32.gmra.mrb[0].mxu0 %v218
    %v1219 = vpop.f32.mrb[0].mxu0
    %v1220 = vadd.f32 %v331, %v1219
    %v1221 = vpop.f32.mrb[0].mxu0
    %1222 = vmatprep.mubr.f32.mxu0 0.0
    %1223 = vmatmul.mubr.f32.gmra.mrb[0].mxu0 %v219
    %v1224 = vpop.f32.mrb[0].mxu0
    %v1225 = vadd.f32 %v331, %v1224
    %v1226 = vpop.f32.mrb[0].mxu0
    %1227 = vmatprep.mubr.f32.mxu0 0.0
    %1228 = vmatmul.mubr.f32.gmra.mrb[0].mxu0 %v220
    %v1229 = vpop.f32.mrb[0].mxu0
    %v1230 = vadd.f32 %v331, %v1229
    %v1231 = vpop.f32.mrb[0].mxu0
    %1232 = vmatprep.mubr.f32.mxu0 0.0
    %1233 = vmatmul.mubr.f32.gmra.mrb[0].mxu0 %v221
    %v1234 = vpop.f32.mrb[0].mxu0
    %v1235 = vadd.f32 %v331, %v1234
    %v1236 = vpop.f32.mrb[0].mxu0
    %1237 = vmatprep.mubr.f32.mxu0 0.0
    %1238 = vmatmul.mubr.f32.gmra.mrb[0].mxu0 %v222
    %v1239 = vpop.f32.mrb[0].mxu0
    %v1240 = vadd.f32 %v331, %v1239
    %v1241 = vpop.f32.mrb[0].mxu0
    %1242 = vmatprep.mubr.f32.mxu0 0.0
    %1243 = vmatmul.mubr.f32.gmra.mrb[0].mxu0 %v223
    %v1244 = vpop.f32.mrb[0].mxu0
    %v1245 = vadd.f32 %v331, %v1244
    %v1246 = vpop.f32.mrb[0].mxu0
    %1247 = vmatprep.mubr.f32.mxu0 0.0
    %1248 = vmatmul.mubr.f32.gmra.mrb[0].mxu0 %v224
    %v1249 = vpop.f32.mrb[0].mxu0
    %v1250 = vadd.f32 %v331, %v1249
    %v1251 = vpop.f32.mrb[0].mxu0
    %1252 = vmatprep.mubr.f32.mxu0 0.0
    %1253 = vmatmul.mubr.f32.gmra.mrb[0].mxu0 %v225
    %v1254 = vpop.f32.mrb[0].mxu0
    %v1255 = vadd.f32 %v331, %v1254
    %v1256 = vpop.f32.mrb[0].mxu0
    %1257 = vmatprep.mubr.f32.mxu0 0.0
    %1258 = vmatmul.mubr.f32.gmra.mrb[0].mxu0 %v226
    %v1259 = vpop.f32.mrb[0].mxu0
    %v1260 = vadd.f32 %v331, %v1259
    %v1261 = vpop.f32.mrb[0].mxu0
    %1262 = vmatprep.mubr.f32.mxu0 0.0
    %1263 = vmatmul.mubr.f32.gmra.mrb[0].mxu0 %v227
    %v1264 = vpop.f32.mrb[0].mxu0
    %v1265 = vadd.f32 %v331, %v1264
    %v1266 = vpop.f32.mrb[0].mxu0
    %1267 = vmatprep.mubr.f32.mxu0 0.0
    %1268 = vmatmul.mubr.f32.gmra.mrb[0].mxu0 %v228
    %v1269 = vpop.f32.mrb[0].mxu0
    %v1270 = vadd.f32 %v331, %v1269
    %v1271 = vpop.f32.mrb[0].mxu0
    %1272 = vmatprep.mubr.f32.mxu0 0.0
    %1273 = vmatmul.mubr.f32.gmra.mrb[0].mxu0 %v229
    %v1274 = vpop.f32.mrb[0].mxu0
    %v1275 = vadd.f32 %v331, %v1274
    %v1276 = vpop.f32.mrb[0].mxu0
    %1277 = vmatprep.mubr.f32.mxu0 0.0
    %1278 = vmatmul.mubr.f32.gmra.mrb[0].mxu0 %v230
    %v1279 = vpop.f32.mrb[0].mxu0
    %v1280 = vadd.f32 %v331, %v1279
    %v1281 = vpop.f32.mrb[0].mxu0
    %1282 = vmatprep.mubr.f32.mxu0 0.0
    %1283 = vmatmul.mubr.f32.gmra.mrb[0].mxu0 %v231
    %v1284 = vpop.f32.mrb[0].mxu0
    %v1285 = vadd.f32 %v331, %v1284
    %v1286 = vpop.f32.mrb[0].mxu0
    %1287 = vmatprep.mubr.f32.mxu0 0.0
    %1288 = vmatmul.mubr.f32.gmra.mrb[0].mxu0 %v232
    %v1289 = vpop.f32.mrb[0].mxu0
    %v1290 = vadd.f32 %v331, %v1289
    %v1291 = vpop.f32.mrb[0].mxu0
    %1292 = vmatprep.mubr.f32.mxu0 0.0
    %1293 = vmatmul.mubr.f32.gmra.mrb[0].mxu0 %v233
    %v1294 = vpop.f32.mrb[0].mxu0
    %v1295 = vadd.f32 %v331, %v1294
    %v1296 = vpop.f32.mrb[0].mxu0
    %1297 = vmatprep.mubr.f32.mxu0 0.0
    %1298 = vmatmul.mubr.f32.gmra.mrb[0].mxu0 %v234
    %v1299 = vpop.f32.mrb[0].mxu0
    %v1300 = vadd.f32 %v331, %v1299
    %v1301 = vpop.f32.mrb[0].mxu0
    %1302 = vmatprep.mubr.f32.mxu0 0.0
    %1303 = vmatmul.mubr.f32.gmra.mrb[0].mxu0 %v235
    %v1304 = vpop.f32.mrb[0].mxu0
    %v1305 = vadd.f32 %v331, %v1304
    %v1306 = vpop.f32.mrb[0].mxu0
    %1307 = vmatprep.mubr.f32.mxu0 0.0
    %1308 = vmatmul.mubr.f32.gmra.mrb[0].mxu0 %v236
    %v1309 = vpop.f32.mrb[0].mxu0
    %v1310 = vadd.f32 %v331, %v1309
    %v1311 = vpop.f32.mrb[0].mxu0
    %1312 = vmatprep.mubr.f32.mxu0 0.0
    %1313 = vmatmul.mubr.f32.gmra.mrb[0].mxu0 %v237
    %v1314 = vpop.f32.mrb[0].mxu0
    %v1315 = vadd.f32 %v331, %v1314
    %v1316 = vpop.f32.mrb[0].mxu0
    %1317 = vmatprep.mubr.f32.mxu0 0.0
    %1318 = vmatmul.mubr.f32.gmra.mrb[0].mxu0 %v238
    %v1319 = vpop.f32.mrb[0].mxu0
    %v1320 = vadd.f32 %v331, %v1319
    %v1321 = vpop.f32.mrb[0].mxu0
    %1322 = vmatprep.mubr.f32.mxu0 0.0
    %1323 = vmatmul.mubr.f32.gmra.mrb[0].mxu0 %v239
    %v1324 = vpop.f32.mrb[0].mxu0
    %v1325 = vadd.f32 %v331, %v1324
    %v1326 = vpop.f32.mrb[0].mxu0
    %1327 = vmatprep.mubr.f32.mxu0 0.0
    %1328 = vmatmul.mubr.f32.gmra.mrb[0].mxu0 %v240
    %v1329 = vpop.f32.mrb[0].mxu0
    %v1330 = vadd.f32 %v331, %v1329
    %v1331 = vpop.f32.mrb[0].mxu0
    %1332 = vmatprep.mubr.f32.mxu0 0.0
    %1333 = vmatmul.mubr.f32.gmra.mrb[0].mxu0 %v241
    %v1334 = vpop.f32.mrb[0].mxu0
    %v1335 = vadd.f32 %v331, %v1334
    %v1336 = vpop.f32.mrb[0].mxu0
    %1337 = vmatprep.mubr.f32.mxu0 0.0
    %1338 = vmatmul.mubr.f32.gmra.mrb[0].mxu0 %v242
    %v1339 = vpop.f32.mrb[0].mxu0
    %v1340 = vadd.f32 %v331, %v1339
    %v1341 = vpop.f32.mrb[0].mxu0
    %1342 = vmatprep.mubr.f32.mxu0 0.0
    %1343 = vmatmul.mubr.f32.gmra.mrb[0].mxu0 %v243
    %v1344 = vpop.f32.mrb[0].mxu0
    %v1345 = vadd.f32 %v331, %v1344
    %v1346 = vpop.f32.mrb[0].mxu0
    %1347 = vmatprep.mubr.f32.mxu0 0.0
    %1348 = vmatmul.mubr.f32.gmra.mrb[0].mxu0 %v244
    %v1349 = vpop.f32.mrb[0].mxu0
    %v1350 = vadd.f32 %v331, %v1349
    %v1351 = vpop.f32.mrb[0].mxu0
    %1352 = vmatprep.mubr.f32.mxu0 0.0
    %1353 = vmatmul.mubr.f32.gmra.mrb[0].mxu0 %v245
    %v1354 = vpop.f32.mrb[0].mxu0
    %v1355 = vadd.f32 %v331, %v1354
    %v1356 = vpop.f32.mrb[0].mxu0
    %1357 = vmatprep.mubr.f32.mxu0 0.0
    %1358 = vmatmul.mubr.f32.gmra.mrb[0].mxu0 %v246
    %v1359 = vpop.f32.mrb[0].mxu0
    %v1360 = vadd.f32 %v331, %v1359
    %v1361 = vpop.f32.mrb[0].mxu0
    %1362 = vmatprep.mubr.f32.mxu0 0.0
    %1363 = vmatmul.mubr.f32.gmra.mrb[0].mxu0 %v247
    %v1364 = vpop.f32.mrb[0].mxu0
    %v1365 = vadd.f32 %v331, %v1364
    %v1366 = vpop.f32.mrb[0].mxu0
    %1367 = vmatprep.mubr.f32.mxu0 0.0
    %1368 = vmatmul.mubr.f32.gmra.mrb[0].mxu0 %v248
    %v1369 = vpop.f32.mrb[0].mxu0
    %v1370 = vadd.f32 %v331, %v1369
    %v1371 = vpop.f32.mrb[0].mxu0
    %1372 = vmatprep.mubr.f32.mxu0 0.0
    %1373 = vmatmul.mubr.f32.gmra.mrb[0].mxu0 %v249
    %v1374 = vpop.f32.mrb[0].mxu0
    %v1375 = vadd.f32 %v331, %v1374
    %v1376 = vpop.f32.mrb[0].mxu0
    %1377 = vmatprep.mubr.f32.mxu0 0.0
    %1378 = vmatmul.mubr.f32.gmra.mrb[0].mxu0 %v250
    %v1379 = vpop.f32.mrb[0].mxu0
    %v1380 = vadd.f32 %v331, %v1379
    %v1381 = vpop.f32.mrb[0].mxu0
    %1382 = vmatprep.mubr.f32.mxu0 0.0
    %1383 = vmatmul.mubr.f32.gmra.mrb[0].mxu0 %v251
    %v1384 = vpop.f32.mrb[0].mxu0
    %v1385 = vadd.f32 %v331, %v1384
    %v1386 = vpop.f32.mrb[0].mxu0
    %1387 = vmatprep.mubr.f32.mxu0 0.0
    %1388 = vmatmul.mubr.f32.gmra.mrb[0].mxu0 %v252
    %v1389 = vpop.f32.mrb[0].mxu0
    %v1390 = vadd.f32 %v331, %v1389
    %v1391 = vpop.f32.mrb[0].mxu0
    %1392 = vmatprep.mubr.f32.mxu0 0.0
    %1393 = vmatmul.mubr.f32.gmra.mrb[0].mxu0 %v253
    %v1394 = vpop.f32.mrb[0].mxu0
    %v1395 = vadd.f32 %v331, %v1394
    %v1396 = vpop.f32.mrb[0].mxu0
    %1397 = vmatprep.mubr.f32.mxu0 0.0
    %1398 = vmatmul.mubr.f32.gmra.mrb[0].mxu0 %v254
    %v1399 = vpop.f32.mrb[0].mxu0
    %v1400 = vadd.f32 %v331, %v1399
    %v1401 = vpop.f32.mrb[0].mxu0
    %1402 = vmatprep.mubr.f32.mxu0 0.0
    %1403 = vmatmul.mubr.f32.gmra.mrb[0].mxu0 %v255
    %v1404 = vpop.f32.mrb[0].mxu0
    %v1405 = vadd.f32 %v331, %v1404
    %v1406 = vpop.f32.mrb[0].mxu0
    %1407 = vmatprep.mubr.f32.mxu0 0.0
    %1408 = vmatmul.mubr.f32.gmra.mrb[0].mxu0 %v256
    %v1409 = vpop.f32.mrb[0].mxu0
    %v1410 = vadd.f32 %v331, %v1409
    %v1411 = vpop.f32.mrb[0].mxu0
    %1412 = vmatprep.mubr.f32.mxu0 0.0
    %1413 = vmatmul.mubr.f32.gmra.mrb[0].mxu0 %v257
    %v1414 = vpop.f32.mrb[0].mxu0
    %v1415 = vadd.f32 %v331, %v1414
    %v1416 = vpop.f32.mrb[0].mxu0
    %1417 = vmatprep.mubr.f32.mxu0 0.0
    %1418 = vmatmul.mubr.f32.gmra.mrb[0].mxu0 %v258
    %v1419 = vpop.f32.mrb[0].mxu0
    %v1420 = vadd.f32 %v331, %v1419
    %v1421 = vpop.f32.mrb[0].mxu0
    %1422 = vmatprep.mubr.f32.mxu0 0.0
    %1423 = vmatmul.mubr.f32.gmra.mrb[0].mxu0 %v259
    %v1424 = vpop.f32.mrb[0].mxu0
    %v1425 = vadd.f32 %v331, %v1424
    %v1426 = vpop.f32.mrb[0].mxu0
    %1427 = vmatprep.mubr.f32.mxu0 0.0
    %1428 = vmatmul.mubr.f32.gmra.mrb[0].mxu0 %v260
    %v1429 = vpop.f32.mrb[0].mxu0
    %v1430 = vadd.f32 %v331, %v1429
    %v1431 = vpop.f32.mrb[0].mxu0
    %1432 = vmatprep.mubr.f32.mxu0 0.0
    %1433 = vmatmul.mubr.f32.gmra.mrb[0].mxu0 %v261
    %v1434 = vpop.f32.mrb[0].mxu0
    %v1435 = vadd.f32 %v331, %v1434
    %v1436 = vpop.f32.mrb[0].mxu0
    %1437 = vmatprep.mubr.f32.mxu0 0.0
    %1438 = vmatmul.mubr.f32.gmra.mrb[0].mxu0 %v262
    %v1439 = vpop.f32.mrb[0].mxu0
    %v1440 = vadd.f32 %v331, %v1439
    %v1441 = vpop.f32.mrb[0].mxu0
    %1442 = vmatprep.mubr.f32.mxu0 0.0
    %1443 = vmatmul.mubr.f32.gmra.mrb[0].mxu0 %v263
    %v1444 = vpop.f32.mrb[0].mxu0
    %v1445 = vadd.f32 %v331, %v1444
    %v1446 = vpop.f32.mrb[0].mxu0
    %1447 = vmatprep.mubr.f32.mxu0 0.0
    %1448 = vmatmul.mubr.f32.gmra.mrb[0].mxu0 %v264
    %v1449 = vpop.f32.mrb[0].mxu0
    %v1450 = vadd.f32 %v331, %v1449
    %v1451 = vpop.f32.mrb[0].mxu0
    %1452 = vmatprep.mubr.f32.mxu0 0.0
    %1453 = vmatmul.mubr.f32.gmra.mrb[0].mxu0 %v265
    %v1454 = vpop.f32.mrb[0].mxu0
    %v1455 = vadd.f32 %v331, %v1454
    %v1456 = vpop.f32.mrb[0].mxu0
    %1457 = vmatprep.mubr.f32.mxu0 0.0
    %1458 = vmatmul.mubr.f32.gmra.mrb[0].mxu0 %v266
    %v1459 = vpop.f32.mrb[0].mxu0
    %v1460 = vadd.f32 %v331, %v1459
    %v1461 = vpop.f32.mrb[0].mxu0
    %1462 = vmatprep.mubr.f32.mxu0 0.0
    %1463 = vmatmul.mubr.f32.gmra.mrb[0].mxu0 %v267
    %v1464 = vpop.f32.mrb[0].mxu0
    %v1465 = vadd.f32 %v331, %v1464
    %v1466 = vpop.f32.mrb[0].mxu0
    %1467 = vmatprep.mubr.f32.mxu0 0.0
    %1468 = vmatmul.mubr.f32.gmra.mrb[0].mxu0 %v268
    %v1469 = vpop.f32.mrb[0].mxu0
    %v1470 = vadd.f32 %v331, %v1469
    %v1471 = vpop.f32.mrb[0].mxu0
    %1472 = vmatprep.mubr.f32.mxu0 0.0
    %1473 = vmatmul.mubr.f32.gmra.mrb[0].mxu0 %v269
    %v1474 = vpop.f32.mrb[0].mxu0
    %v1475 = vadd.f32 %v331, %v1474
    %v1476 = vpop.f32.mrb[0].mxu0
    %1477 = vmatprep.mubr.f32.mxu0 0.0
    %1478 = vmatmul.mubr.f32.gmra.mrb[0].mxu0 %v270
    %v1479 = vpop.f32.mrb[0].mxu0
    %v1480 = vadd.f32 %v331, %v1479
    %v1481 = vpop.f32.mrb[0].mxu0
    %1482 = vmatprep.mubr.f32.mxu0 0.0
    %1483 = vmatmul.mubr.f32.gmra.mrb[0].mxu0 %v271
    %v1484 = vpop.f32.mrb[0].mxu0
    %v1485 = vadd.f32 %v331, %v1484
    %v1486 = vpop.f32.mrb[0].mxu0
    %1487 = vmatprep.mubr.f32.mxu0 0.0
    %1488 = vmatmul.mubr.f32.gmra.mrb[0].mxu0 %v272
    %v1489 = vpop.f32.mrb[0].mxu0
    %v1490 = vadd.f32 %v331, %v1489
    %v1491 = vpop.f32.mrb[0].mxu0
    %1492 = vmatprep.mubr.f32.mxu0 0.0
    %1493 = vmatmul.mubr.f32.gmra.mrb[0].mxu0 %v273
    %v1494 = vpop.f32.mrb[0].mxu0
    %v1495 = vadd.f32 %v331, %v1494
    %v1496 = vpop.f32.mrb[0].mxu0
    %1497 = vmatprep.mubr.f32.mxu0 0.0
    %1498 = vmatmul.mubr.f32.gmra.mrb[0].mxu0 %v274
    %v1499 = vpop.f32.mrb[0].mxu0
    %v1500 = vadd.f32 %v331, %v1499
    %v1501 = vpop.f32.mrb[0].mxu0
    %1502 = vmatprep.mubr.f32.mxu0 0.0
    %1503 = vmatmul.mubr.f32.gmra.mrb[0].mxu0 %v275
    %v1504 = vpop.f32.mrb[0].mxu0
    %v1505 = vadd.f32 %v331, %v1504
    %v1506 = vpop.f32.mrb[0].mxu0
    %1507 = vmatprep.mubr.f32.mxu0 0.0
    %1508 = vmatmul.mubr.f32.gmra.mrb[0].mxu0 %v276
    %v1509 = vpop.f32.mrb[0].mxu0
    %v1510 = vadd.f32 %v331, %v1509
    %v1511 = vpop.f32.mrb[0].mxu0
    %1512 = vmatprep.mubr.f32.mxu0 0.0
    %1513 = vmatmul.mubr.f32.gmra.mrb[0].mxu0 %v277
    %v1514 = vpop.f32.mrb[0].mxu0
    %v1515 = vadd.f32 %v331, %v1514
    %v1516 = vpop.f32.mrb[0].mxu0
    %1517 = vmatprep.mubr.f32.mxu0 0.0
    %1518 = vmatmul.mubr.f32.gmra.mrb[0].mxu0 %v278
    %v1519 = vpop.f32.mrb[0].mxu0
    %v1520 = vadd.f32 %v331, %v1519
    %v1521 = vpop.f32.mrb[0].mxu0
    %1522 = vmatprep.mubr.f32.mxu0 0.0
    %1523 = vmatmul.mubr.f32.gmra.mrb[0].mxu0 %v279
    %v1524 = vpop.f32.mrb[0].mxu0
    %v1525 = vadd.f32 %v331, %v1524
    %v1526 = vpop.f32.mrb[0].mxu0
    %1527 = vmatprep.mubr.f32.mxu0 0.0
    %1528 = vmatmul.mubr.f32.gmra.mrb[0].mxu0 %v280
    %v1529 = vpop.f32.mrb[0].mxu0
    %v1530 = vadd.f32 %v331, %v1529
    %v1531 = vpop.f32.mrb[0].mxu0
    %1532 = vmatprep.mubr.f32.mxu0 0.0
    %1533 = vmatmul.mubr.f32.gmra.mrb[0].mxu0 %v281
    %v1534 = vpop.f32.mrb[0].mxu0
    %v1535 = vadd.f32 %v331, %v1534
    %v1536 = vpop.f32.mrb[0].mxu0
    %1537 = vmatprep.mubr.f32.mxu0 0.0
    %1538 = vmatmul.mubr.f32.gmra.mrb[0].mxu0 %v282
    %v1539 = vpop.f32.mrb[0].mxu0
    %v1540 = vadd.f32 %v331, %v1539
    %v1541 = vpop.f32.mrb[0].mxu0
    %1542 = vmatprep.mubr.f32.mxu0 0.0
    %1543 = vmatmul.mubr.f32.gmra.mrb[0].mxu0 %v283
    %v1544 = vpop.f32.mrb[0].mxu0
    %v1545 = vadd.f32 %v331, %v1544
    %v1546 = vpop.f32.mrb[0].mxu0
    %1547 = vmatprep.mubr.f32.mxu0 0.0
    %1548 = vmatmul.mubr.f32.gmra.mrb[0].mxu0 %v284
    %v1549 = vpop.f32.mrb[0].mxu0
    %v1550 = vadd.f32 %v331, %v1549
    %v1551 = vpop.f32.mrb[0].mxu0
    %1552 = vmatprep.mubr.f32.mxu0 0.0
    %1553 = vmatmul.mubr.f32.gmra.mrb[0].mxu0 %v285
    %v1554 = vpop.f32.mrb[0].mxu0
    %v1555 = vadd.f32 %v331, %v1554
    %v1556 = vpop.f32.mrb[0].mxu0
    %1557 = vmatprep.mubr.f32.mxu0 0.0
    %1558 = vmatmul.mubr.f32.gmra.mrb[0].mxu0 %v286
    %v1559 = vpop.f32.mrb[0].mxu0
    %v1560 = vadd.f32 %v331, %v1559
    %v1561 = vpop.f32.mrb[0].mxu0
    %1562 = vmatprep.mubr.f32.mxu0 0.0
    %1563 = vmatmul.mubr.f32.gmra.mrb[0].mxu0 %v287
    %v1564 = vpop.f32.mrb[0].mxu0
    %v1565 = vadd.f32 %v331, %v1564
    %v1566 = vpop.f32.mrb[0].mxu0
    %1567 = vmatprep.mubr.f32.mxu0 0.0
    %1568 = vmatmul.mubr.f32.gmra.mrb[0].mxu0 %v288
    %v1569 = vpop.f32.mrb[0].mxu0
    %v1570 = vadd.f32 %v331, %v1569
    %v1571 = vpop.f32.mrb[0].mxu0
    %1572 = vmatprep.mubr.f32.mxu0 0.0
    %1573 = vmatmul.mubr.f32.gmra.mrb[0].mxu0 %v289
    %v1574 = vpop.f32.mrb[0].mxu0
    %v1575 = vadd.f32 %v331, %v1574
    %v1576 = vpop.f32.mrb[0].mxu0
    %1577 = vmatprep.mubr.f32.mxu0 0.0
    %1578 = vmatmul.mubr.f32.gmra.mrb[0].mxu0 %v290
    %v1579 = vpop.f32.mrb[0].mxu0
    %v1580 = vadd.f32 %v331, %v1579
    %v1581 = vpop.f32.mrb[0].mxu0
    %1582 = vmatprep.mubr.f32.mxu0 0.0
    %1583 = vmatmul.mubr.f32.gmra.mrb[0].mxu0 %v291
    %v1584 = vpop.f32.mrb[0].mxu0
    %v1585 = vadd.f32 %v331, %v1584
    %v1586 = vpop.f32.mrb[0].mxu0
    %1587 = vmatprep.mubr.f32.mxu0 0.0
    %1588 = vmatmul.mubr.f32.gmra.mrb[0].mxu0 %v292
    %v1589 = vpop.f32.mrb[0].mxu0
    %v1590 = vadd.f32 %v331, %v1589
    %v1591 = vpop.f32.mrb[0].mxu0
    %1592 = vmatprep.mubr.f32.mxu0 0.0
    %1593 = vmatmul.mubr.f32.gmra.mrb[0].mxu0 %v293
    %v1594 = vpop.f32.mrb[0].mxu0
    %v1595 = vadd.f32 %v331, %v1594
    %v1596 = vpop.f32.mrb[0].mxu0
    %1597 = vmatprep.mubr.f32.mxu0 0.0
    %1598 = vmatmul.mubr.f32.gmra.mrb[0].mxu0 %v294
    %v1599 = vpop.f32.mrb[0].mxu0
    %v1600 = vadd.f32 %v331, %v1599
    %v1601 = vpop.f32.mrb[0].mxu0
    %1602 = vmatprep.mubr.f32.mxu0 0.0
    %1603 = vmatmul.mubr.f32.gmra.mrb[0].mxu0 %v295
    %v1604 = vpop.f32.mrb[0].mxu0
    %v1605 = vadd.f32 %v331, %v1604
    %v1606 = vpop.f32.mrb[0].mxu0
    %1607 = vmatprep.mubr.f32.mxu0 0.0
    %1608 = vmatmul.mubr.f32.gmra.mrb[0].mxu0 %v296
    %v1609 = vpop.f32.mrb[0].mxu0
    %v1610 = vadd.f32 %v331, %v1609
    %v1611 = vpop.f32.mrb[0].mxu0
    %1612 = vmatprep.mubr.f32.mxu0 0.0
    %1613 = vmatmul.mubr.f32.gmra.mrb[0].mxu0 %v297
    %v1614 = vpop.f32.mrb[0].mxu0
    %v1615 = vadd.f32 %v331, %v1614
    %v1616 = vpop.f32.mrb[0].mxu0
    %1617 = vmatprep.mubr.f32.mxu0 0.0
    %1618 = vmatmul.mubr.f32.gmra.mrb[0].mxu0 %v298
    %v1619 = vpop.f32.mrb[0].mxu0
    %v1620 = vadd.f32 %v331, %v1619
    %v1621 = vpop.f32.mrb[0].mxu0
    %1622 = vmatprep.mubr.f32.mxu0 0.0
    %1623 = vmatmul.mubr.f32.gmra.mrb[0].mxu0 %v299
    %v1624 = vpop.f32.mrb[0].mxu0
    %v1625 = vadd.f32 %v331, %v1624
    %v1626 = vpop.f32.mrb[0].mxu0
    %1627 = vmatprep.mubr.f32.mxu0 0.0
    %1628 = vmatmul.mubr.f32.gmra.mrb[0].mxu0 %v300
    %v1629 = vpop.f32.mrb[0].mxu0
    %v1630 = vadd.f32 %v331, %v1629
    %v1631 = vpop.f32.mrb[0].mxu0
    %1632 = vmatprep.mubr.f32.mxu0 0.0
    %1633 = vmatmul.mubr.f32.gmra.mrb[0].mxu0 %v301
    %v1634 = vpop.f32.mrb[0].mxu0
    %v1635 = vadd.f32 %v331, %v1634
    %v1636 = vpop.f32.mrb[0].mxu0
    %1637 = vmatprep.mubr.f32.mxu0 0.0
    %1638 = vmatmul.mubr.f32.gmra.mrb[0].mxu0 %v302
    %v1639 = vpop.f32.mrb[0].mxu0
    %v1640 = vadd.f32 %v331, %v1639
    %v1641 = vpop.f32.mrb[0].mxu0
    %1642 = vmatprep.mubr.f32.mxu0 0.0
    %1643 = vmatmul.mubr.f32.gmra.mrb[0].mxu0 %v303
    %v1644 = vpop.f32.mrb[0].mxu0
    %v1645 = vadd.f32 %v331, %v1644
    %v1646 = vpop.f32.mrb[0].mxu0
    %1647 = vmatprep.mubr.f32.mxu0 0.0
    %1648 = vmatmul.mubr.f32.gmra.mrb[0].mxu0 %v304
    %v1649 = vpop.f32.mrb[0].mxu0
    %v1650 = vadd.f32 %v331, %v1649
    %v1651 = vpop.f32.mrb[0].mxu0
    %1652 = vmatprep.mubr.f32.mxu0 0.0
    %1653 = vmatmul.mubr.f32.gmra.mrb[0].mxu0 %v305
    %v1654 = vpop.f32.mrb[0].mxu0
    %v1655 = vadd.f32 %v331, %v1654
    %v1656 = vpop.f32.mrb[0].mxu0
    %1657 = vmatprep.mubr.f32.mxu0 0.0
    %1658 = vmatmul.mubr.f32.gmra.mrb[0].mxu0 %v306
    %v1659 = vpop.f32.mrb[0].mxu0
    %v1660 = vadd.f32 %v331, %v1659
    %v1661 = vpop.f32.mrb[0].mxu0
    %1662 = vmatprep.mubr.f32.mxu0 0.0
    %1663 = vmatmul.mubr.f32.gmra.mrb[0].mxu0 %v307
    %v1664 = vpop.f32.mrb[0].mxu0
    %v1665 = vadd.f32 %v331, %v1664
    %v1666 = vpop.f32.mrb[0].mxu0
    %1667 = vmatprep.mubr.f32.mxu0 0.0
    %1668 = vmatmul.mubr.f32.gmra.mrb[0].mxu0 %v308
    %v1669 = vpop.f32.mrb[0].mxu0
    %v1670 = vadd.f32 %v331, %v1669
    %v1671 = vpop.f32.mrb[0].mxu0
    %1672 = vmatprep.mubr.f32.mxu0 0.0
    %1673 = vmatmul.mubr.f32.gmra.mrb[0].mxu0 %v309
    %v1674 = vpop.f32.mrb[0].mxu0
    %v1675 = vadd.f32 %v331, %v1674
    %v1676 = vpop.f32.mrb[0].mxu0
    %1677 = vdwg.mxu0
    %v1678 = vtanh.pop %v400
    %v1679 = vtanh.pop %v405
    %v1680 = vtanh.pop %v410
    %v1681 = vtanh.pop %v415
    %v1682 = vtanh.pop %v420
    %v1683 = vtanh.pop %v425
    %v1684 = vtanh.pop %v430
    %v1685 = vtanh.pop %v435
    %v1686 = vtanh.pop %v440
    %v1687 = vtanh.pop %v445
    %v1688 = vtanh.pop %v450
    %v1689 = vtanh.pop %v455
    %v1690 = vtanh.pop %v460
    %v1691 = vtanh.pop %v465
    %v1692 = vtanh.pop %v470
    %v1693 = vtanh.pop %v475
    %v1694 = vtanh.pop %v480
    %v1695 = vtanh.pop %v485
    %v1696 = vtanh.pop %v490
    %v1697 = vtanh.pop %v495
    %v1698 = vtanh.pop %v500
    %v1699 = vtanh.pop %v505
    %v1700 = vtanh.pop %v510
    %v1701 = vtanh.pop %v515
    %v1702 = vtanh.pop %v520
    %v1703 = vtanh.pop %v525
    %v1704 = vtanh.pop %v530
    %v1705 = vtanh.pop %v535
    %v1706 = vtanh.pop %v540
    %v1707 = vtanh.pop %v545
    %v1708 = vtanh.pop %v550
    %v1709 = vtanh.pop %v555
    %v1710 = vtanh.pop %v560
    %v1711 = vtanh.pop %v565
    %v1712 = vtanh.pop %v570
    %v1713 = vtanh.pop %v575
    %v1714 = vtanh.pop %v580
    %v1715 = vtanh.pop %v585
    %v1716 = vtanh.pop %v590
    %v1717 = vtanh.pop %v595
    %v1718 = vtanh.pop %v600
    %v1719 = vtanh.pop %v605
    %v1720 = vtanh.pop %v610
    %v1721 = vtanh.pop %v615
    %v1722 = vtanh.pop %v620
    %v1723 = vtanh.pop %v625
    %v1724 = vtanh.pop %v630
    %v1725 = vtanh.pop %v635
    %v1726 = vtanh.pop %v640
    %v1727 = vtanh.pop %v645
    %v1728 = vtanh.pop %v650
    %v1729 = vtanh.pop %v655
    %v1730 = vtanh.pop %v660
    %v1731 = vtanh.pop %v665
    %v1732 = vtanh.pop %v670
    %v1733 = vtanh.pop %v675
    %v1734 = vtanh.pop %v680
    %v1735 = vtanh.pop %v685
    %v1736 = vtanh.pop %v690
    %v1737 = vtanh.pop %v695
    %v1738 = vtanh.pop %v700
    %v1739 = vtanh.pop %v705
    %v1740 = vtanh.pop %v710
    %v1741 = vtanh.pop %v715
    %v1742 = vtanh.pop %v720
    %v1743 = vtanh.pop %v725
    %v1744 = vtanh.pop %v730
    %v1745 = vtanh.pop %v735
    %v1746 = vtanh.pop %v740
    %v1747 = vtanh.pop %v745
    %v1748 = vtanh.pop %v750
    %v1749 = vtanh.pop %v755
    %v1750 = vtanh.pop %v760
    %v1751 = vtanh.pop %v765
    %v1752 = vtanh.pop %v770
    %v1753 = vtanh.pop %v775
    %v1754 = vtanh.pop %v780
    %v1755 = vtanh.pop %v785
    %v1756 = vtanh.pop %v790
    %v1757 = vtanh.pop %v795
    %v1758 = vtanh.pop %v800
    %v1759 = vtanh.pop %v805
    %v1760 = vtanh.pop %v810
    %v1761 = vtanh.pop %v815
    %v1762 = vtanh.pop %v820
    %v1763 = vtanh.pop %v825
    %v1764 = vtanh.pop %v830
    %v1765 = vtanh.pop %v835
    %v1766 = vtanh.pop %v840
    %v1767 = vtanh.pop %v845
    %v1768 = vtanh.pop %v850
    %v1769 = vtanh.pop %v855
    %v1770 = vtanh.pop %v860
    %v1771 = vtanh.pop %v865
    %v1772 = vtanh.pop %v870
    %v1773 = vtanh.pop %v875
    %v1774 = vtanh.pop %v880
    %v1775 = vtanh.pop %v885
    %v1776 = vtanh.pop %v890
    %v1777 = vtanh.pop %v895
    %v1778 = vtanh.pop %v900
    %v1779 = vtanh.pop %v905
    %v1780 = vtanh.pop %v910
    %v1781 = vtanh.pop %v915
    %v1782 = vtanh.pop %v920
    %v1783 = vtanh.pop %v925
    %v1784 = vtanh.pop %v930
    %v1785 = vtanh.pop %v935
    %v1786 = vtanh.pop %v940
    %v1787 = vtanh.pop %v945
    %v1788 = vtanh.pop %v950
    %v1789 = vtanh.pop %v955
    %v1790 = vtanh.pop %v960
    %v1791 = vtanh.pop %v965
    %v1792 = vtanh.pop %v970
    %v1793 = vtanh.pop %v975
    %v1794 = vtanh.pop %v980
    %v1795 = vtanh.pop %v985
    %v1796 = vtanh.pop %v990
    %v1797 = vtanh.pop %v995
    %v1798 = vtanh.pop %v1000
    %v1799 = vtanh.pop %v1005
    %v1800 = vtanh.pop %v1010
    %v1801 = vtanh.pop %v1015
    %v1802 = vtanh.pop %v1020
    %v1803 = vtanh.pop %v1025
    %v1804 = vtanh.pop %v1030
    %v1805 = vtanh.pop %v1035
    %v1806 = vtanh.pop %v1040
    %v1807 = vtanh.pop %v1045
    %v1808 = vtanh.pop %v1050
    %v1809 = vtanh.pop %v1055
    %v1810 = vtanh.pop %v1060
    %v1811 = vtanh.pop %v1065
    %v1812 = vtanh.pop %v1070
    %v1813 = vtanh.pop %v1075
    %v1814 = vtanh.pop %v1080
    %v1815 = vtanh.pop %v1085
    %v1816 = vtanh.pop %v1090
    %v1817 = vtanh.pop %v1095
    %v1818 = vtanh.pop %v1100
    %v1819 = vtanh.pop %v1105
    %v1820 = vtanh.pop %v1110
    %v1821 = vtanh.pop %v1115
    %v1822 = vtanh.pop %v1120
    %v1823 = vtanh.pop %v1125
    %v1824 = vtanh.pop %v1130
    %v1825 = vtanh.pop %v1135
    %v1826 = vtanh.pop %v1140
    %v1827 = vtanh.pop %v1145
    %v1828 = vtanh.pop %v1150
    %v1829 = vtanh.pop %v1155
    %v1830 = vtanh.pop %v1160
    %v1831 = vtanh.pop %v1165
    %v1832 = vtanh.pop %v1170
    %v1833 = vtanh.pop %v1175
    %v1834 = vtanh.pop %v1180
    %v1835 = vtanh.pop %v1185
    %v1836 = vtanh.pop %v1190
    %v1837 = vtanh.pop %v1195
    %v1838 = vtanh.pop %v1200
    %v1839 = vtanh.pop %v1205
    %v1840 = vtanh.pop %v1210
    %v1841 = vtanh.pop %v1215
    %v1842 = vtanh.pop %v1220
    %v1843 = vtanh.pop %v1225
    %v1844 = vtanh.pop %v1230
    %v1845 = vtanh.pop %v1235
    %v1846 = vtanh.pop %v1240
    %v1847 = vtanh.pop %v1245
    %v1848 = vtanh.pop %v1250
    %v1849 = vtanh.pop %v1255
    %v1850 = vtanh.pop %v1260
    %v1851 = vtanh.pop %v1265
    %v1852 = vtanh.pop %v1270
    %v1853 = vtanh.pop %v1275
    %v1854 = vtanh.pop %v1280
    %v1855 = vtanh.pop %v1285
    %v1856 = vtanh.pop %v1290
    %v1857 = vtanh.pop %v1295
    %v1858 = vtanh.pop %v1300
    %v1859 = vtanh.pop %v1305
    %v1860 = vtanh.pop %v1310
    %v1861 = vtanh.pop %v1315
    %v1862 = vtanh.pop %v1320
    %v1863 = vtanh.pop %v1325
    %v1864 = vtanh.pop %v1330
    %v1865 = vtanh.pop %v1335
    %v1866 = vtanh.pop %v1340
    %v1867 = vtanh.pop %v1345
    %v1868 = vtanh.pop %v1350
    %v1869 = vtanh.pop %v1355
    %v1870 = vtanh.pop %v1360
    %v1871 = vtanh.pop %v1365
    %v1872 = vtanh.pop %v1370
    %v1873 = vtanh.pop %v1375
    %v1874 = vtanh.pop %v1380
    %v1875 = vtanh.pop %v1385
    %v1876 = vtanh.pop %v1390
    %v1877 = vtanh.pop %v1395
    %v1878 = vtanh.pop %v1400
    %v1879 = vtanh.pop %v1405
    %v1880 = vtanh.pop %v1410
    %v1881 = vtanh.pop %v1415
    %v1882 = vtanh.pop %v1420
    %v1883 = vtanh.pop %v1425
    %v1884 = vtanh.pop %v1430
    %v1885 = vtanh.pop %v1435
    %v1886 = vtanh.pop %v1440
    %v1887 = vtanh.pop %v1445
    %v1888 = vtanh.pop %v1450
    %v1889 = vtanh.pop %v1455
    %v1890 = vtanh.pop %v1460
    %v1891 = vtanh.pop %v1465
    %v1892 = vtanh.pop %v1470
    %v1893 = vtanh.pop %v1475
    %v1894 = vtanh.pop %v1480
    %v1895 = vtanh.pop %v1485
    %v1896 = vtanh.pop %v1490
    %v1897 = vtanh.pop %v1495
    %v1898 = vtanh.pop %v1500
    %v1899 = vtanh.pop %v1505
    %v1900 = vtanh.pop %v1510
    %v1901 = vtanh.pop %v1515
    %v1902 = vtanh.pop %v1520
    %v1903 = vtanh.pop %v1525
    %v1904 = vtanh.pop %v1530
    %v1905 = vtanh.pop %v1535
    %v1906 = vtanh.pop %v1540
    %v1907 = vtanh.pop %v1545
    %v1908 = vtanh.pop %v1550
    %v1909 = vtanh.pop %v1555
    %v1910 = vtanh.pop %v1560
    %v1911 = vtanh.pop %v1565
    %v1912 = vtanh.pop %v1570
    %v1913 = vtanh.pop %v1575
    %v1914 = vtanh.pop %v1580
    %v1915 = vtanh.pop %v1585
    %v1916 = vtanh.pop %v1590
    %v1917 = vtanh.pop %v1595
    %v1918 = vtanh.pop %v1600
    %v1919 = vtanh.pop %v1605
    %v1920 = vtanh.pop %v1610
    %v1921 = vtanh.pop %v1615
    %v1922 = vtanh.pop %v1620
    %v1923 = vtanh.pop %v1625
    %v1924 = vtanh.pop %v1630
    %v1925 = vtanh.pop %v1635
    %v1926 = vtanh.pop %v1640
    %v1927 = vtanh.pop %v1645
    %v1928 = vtanh.pop %v1650
    %v1929 = vtanh.pop %v1655
    %v1930 = vtanh.pop %v1660
    %v1931 = vtanh.pop %v1665
    %v1932 = vtanh.pop %v1670
    %v1933 = vtanh.pop %v1675
    %v1934 = vlaneseq
    %v1935 = vand.u32 %v1934, 127
    %v1936 = vadd.s32 %v1935, 128
    %v1937 = vadd.s32 %v1935, 256
    %v1938 = vadd.s32 %v1935, 384
    %v1939 = vadd.s32 %v1935, 512
    %v1940 = vadd.s32 %v1935, 640
    %v1941 = vadd.s32 %v1935, 768
    %v1942 = vadd.s32 %v1935, 896
    %v1943 = vadd.s32 %v1935, 1024
    %v1944 = vadd.s32 %v1935, 1152
    %v1945 = vadd.s32 %v1935, 1280
    %v1946 = vadd.s32 %v1935, 1408
    %v1947 = vadd.s32 %v1935, 1536
    %v1948 = vadd.s32 %v1935, 1664
    %v1949 = vadd.s32 %v1935, 1792
    %v1950 = vadd.s32 %v1935, 1920
    %v1951 = vlaneseq
    %v1952 = vshrl.u32 %v1951, 7
    %s1953 = sadd.s32 0, 0
    %s1954 = smul.u32 %s1953, 2048
    %v1955 = vstv %s1954
    %v1956 = vadd.s32 %v1935, %v1955
    %v1957 = vadd.s32 %v1936, %v1955
    %v1958 = vadd.s32 %v1937, %v1955
    %v1959 = vadd.s32 %v1938, %v1955
    %v1960 = vadd.s32 %v1939, %v1955
    %v1961 = vadd.s32 %v1940, %v1955
    %v1962 = vadd.s32 %v1941, %v1955
    %v1963 = vadd.s32 %v1942, %v1955
    %v1964 = vadd.s32 %v1943, %v1955
    %v1965 = vadd.s32 %v1944, %v1955
    %v1966 = vadd.s32 %v1945, %v1955
    %v1967 = vadd.s32 %v1946, %v1955
    %v1968 = vadd.s32 %v1947, %v1955
    %v1969 = vadd.s32 %v1948, %v1955
    %v1970 = vadd.s32 %v1949, %v1955
    %v1971 = vadd.s32 %v1950, %v1955
    %vm1972 = vcmp.lt.s32.totalorder %v1956, 2048
    %vm1973 = vcmp.lt.s32.totalorder %v1957, 2048
    %vm1974 = vcmp.lt.s32.totalorder %v1958, 2048
    %vm1975 = vcmp.lt.s32.totalorder %v1959, 2048
    %vm1976 = vcmp.lt.s32.totalorder %v1960, 2048
    %vm1977 = vcmp.lt.s32.totalorder %v1961, 2048
    %vm1978 = vcmp.lt.s32.totalorder %v1962, 2048
    %vm1979 = vcmp.lt.s32.totalorder %v1963, 2048
    %vm1980 = vcmp.lt.s32.totalorder %v1964, 2048
    %vm1981 = vcmp.lt.s32.totalorder %v1965, 2048
    %vm1982 = vcmp.lt.s32.totalorder %v1966, 2048
    %vm1983 = vcmp.lt.s32.totalorder %v1967, 2048
    %vm1984 = vcmp.lt.s32.totalorder %v1968, 2048
    %vm1985 = vcmp.lt.s32.totalorder %v1969, 2048
    %vm1986 = vcmp.lt.s32.totalorder %v1970, 2048
    %vm1987 = vcmp.lt.s32.totalorder %v1971, 2048
    %vm1988 = vcmp.lt.s32.totalorder %v1935, 0
    %v1989 = vsub.s32 0, %v1935
    %v1990 = vsel %vm1988, %v1989, %v1935
    %v1991 = vshrl.u32 %v1990, 2
    %v1992 = vand.u32 %v1990, 3
    %v1993 = vsub.s32 0, %v1992
    %v1994 = vsel %vm1988, %v1993, %v1992
    %vm1995 = vcmp.lt.s32.totalorder %v1936, 0
    %v1996 = vsub.s32 0, %v1936
    %v1997 = vsel %vm1995, %v1996, %v1936
    %v1998 = vshrl.u32 %v1997, 2
    %v1999 = vand.u32 %v1997, 3
    %v2000 = vsub.s32 0, %v1999
    %v2001 = vsel %vm1995, %v2000, %v1999
    %vm2002 = vcmp.lt.s32.totalorder %v1937, 0
    %v2003 = vsub.s32 0, %v1937
    %v2004 = vsel %vm2002, %v2003, %v1937
    %v2005 = vshrl.u32 %v2004, 2
    %v2006 = vand.u32 %v2004, 3
    %v2007 = vsub.s32 0, %v2006
    %v2008 = vsel %vm2002, %v2007, %v2006
    %vm2009 = vcmp.lt.s32.totalorder %v1938, 0
    %v2010 = vsub.s32 0, %v1938
    %v2011 = vsel %vm2009, %v2010, %v1938
    %v2012 = vshrl.u32 %v2011, 2
    %v2013 = vand.u32 %v2011, 3
    %v2014 = vsub.s32 0, %v2013
    %v2015 = vsel %vm2009, %v2014, %v2013
    %vm2016 = vcmp.lt.s32.totalorder %v1939, 0
    %v2017 = vsub.s32 0, %v1939
    %v2018 = vsel %vm2016, %v2017, %v1939
    %v2019 = vshrl.u32 %v2018, 2
    %v2020 = vand.u32 %v2018, 3
    %v2021 = vsub.s32 0, %v2020
    %v2022 = vsel %vm2016, %v2021, %v2020
    %vm2023 = vcmp.lt.s32.totalorder %v1940, 0
    %v2024 = vsub.s32 0, %v1940
    %v2025 = vsel %vm2023, %v2024, %v1940
    %v2026 = vshrl.u32 %v2025, 2
    %v2027 = vand.u32 %v2025, 3
    %v2028 = vsub.s32 0, %v2027
    %v2029 = vsel %vm2023, %v2028, %v2027
    %vm2030 = vcmp.lt.s32.totalorder %v1941, 0
    %v2031 = vsub.s32 0, %v1941
    %v2032 = vsel %vm2030, %v2031, %v1941
    %v2033 = vshrl.u32 %v2032, 2
    %v2034 = vand.u32 %v2032, 3
    %v2035 = vsub.s32 0, %v2034
    %v2036 = vsel %vm2030, %v2035, %v2034
    %vm2037 = vcmp.lt.s32.totalorder %v1942, 0
    %v2038 = vsub.s32 0, %v1942
    %v2039 = vsel %vm2037, %v2038, %v1942
    %v2040 = vshrl.u32 %v2039, 2
    %v2041 = vand.u32 %v2039, 3
    %v2042 = vsub.s32 0, %v2041
    %v2043 = vsel %vm2037, %v2042, %v2041
    %vm2044 = vcmp.lt.s32.totalorder %v1943, 0
    %v2045 = vsub.s32 0, %v1943
    %v2046 = vsel %vm2044, %v2045, %v1943
    %v2047 = vshrl.u32 %v2046, 2
    %v2048 = vand.u32 %v2046, 3
    %v2049 = vsub.s32 0, %v2048
    %v2050 = vsel %vm2044, %v2049, %v2048
    %vm2051 = vcmp.lt.s32.totalorder %v1944, 0
    %v2052 = vsub.s32 0, %v1944
    %v2053 = vsel %vm2051, %v2052, %v1944
    %v2054 = vshrl.u32 %v2053, 2
    %v2055 = vand.u32 %v2053, 3
    %v2056 = vsub.s32 0, %v2055
    %v2057 = vsel %vm2051, %v2056, %v2055
    %vm2058 = vcmp.lt.s32.totalorder %v1945, 0
    %v2059 = vsub.s32 0, %v1945
    %v2060 = vsel %vm2058, %v2059, %v1945
    %v2061 = vshrl.u32 %v2060, 2
    %v2062 = vand.u32 %v2060, 3
    %v2063 = vsub.s32 0, %v2062
    %v2064 = vsel %vm2058, %v2063, %v2062
    %vm2065 = vcmp.lt.s32.totalorder %v1946, 0
    %v2066 = vsub.s32 0, %v1946
    %v2067 = vsel %vm2065, %v2066, %v1946
    %v2068 = vshrl.u32 %v2067, 2
    %v2069 = vand.u32 %v2067, 3
    %v2070 = vsub.s32 0, %v2069
    %v2071 = vsel %vm2065, %v2070, %v2069
    %vm2072 = vcmp.lt.s32.totalorder %v1947, 0
    %v2073 = vsub.s32 0, %v1947
    %v2074 = vsel %vm2072, %v2073, %v1947
    %v2075 = vshrl.u32 %v2074, 2
    %v2076 = vand.u32 %v2074, 3
    %v2077 = vsub.s32 0, %v2076
    %v2078 = vsel %vm2072, %v2077, %v2076
    %vm2079 = vcmp.lt.s32.totalorder %v1948, 0
    %v2080 = vsub.s32 0, %v1948
    %v2081 = vsel %vm2079, %v2080, %v1948
    %v2082 = vshrl.u32 %v2081, 2
    %v2083 = vand.u32 %v2081, 3
    %v2084 = vsub.s32 0, %v2083
    %v2085 = vsel %vm2079, %v2084, %v2083
    %vm2086 = vcmp.lt.s32.totalorder %v1949, 0
    %v2087 = vsub.s32 0, %v1949
    %v2088 = vsel %vm2086, %v2087, %v1949
    %v2089 = vshrl.u32 %v2088, 2
    %v2090 = vand.u32 %v2088, 3
    %v2091 = vsub.s32 0, %v2090
    %v2092 = vsel %vm2086, %v2091, %v2090
    %vm2093 = vcmp.lt.s32.totalorder %v1950, 0
    %v2094 = vsub.s32 0, %v1950
    %v2095 = vsel %vm2093, %v2094, %v1950
    %v2096 = vshrl.u32 %v2095, 2
    %v2097 = vand.u32 %v2095, 3
    %v2098 = vsub.s32 0, %v2097
    %v2099 = vsel %vm2093, %v2098, %v2097
    %vm2100 = vcmp.ne.s32.totalorder %v1994, 0
    %vm2101 = vcmp.ne.s32.totalorder %v2001, 0
    %vm2102 = vcmp.ne.s32.totalorder %v2008, 0
    %vm2103 = vcmp.ne.s32.totalorder %v2015, 0
    %vm2104 = vcmp.ne.s32.totalorder %v2022, 0
    %vm2105 = vcmp.ne.s32.totalorder %v2029, 0
    %vm2106 = vcmp.ne.s32.totalorder %v2036, 0
    %vm2107 = vcmp.ne.s32.totalorder %v2043, 0
    %vm2108 = vcmp.ne.s32.totalorder %v2050, 0
    %vm2109 = vcmp.ne.s32.totalorder %v2057, 0
    %vm2110 = vcmp.ne.s32.totalorder %v2064, 0
    %vm2111 = vcmp.ne.s32.totalorder %v2071, 0
    %vm2112 = vcmp.ne.s32.totalorder %v2078, 0
    %vm2113 = vcmp.ne.s32.totalorder %v2085, 0
    %vm2114 = vcmp.ne.s32.totalorder %v2092, 0
    %vm2115 = vcmp.ne.s32.totalorder %v2099, 0
    %vm2116 = vcmp.lt.s32.totalorder %v1994, 0
    %vm2117 = vcmp.lt.s32.totalorder %v2001, 0
    %vm2118 = vcmp.lt.s32.totalorder %v2008, 0
    %vm2119 = vcmp.lt.s32.totalorder %v2015, 0
    %vm2120 = vcmp.lt.s32.totalorder %v2022, 0
    %vm2121 = vcmp.lt.s32.totalorder %v2029, 0
    %vm2122 = vcmp.lt.s32.totalorder %v2036, 0
    %vm2123 = vcmp.lt.s32.totalorder %v2043, 0
    %vm2124 = vcmp.lt.s32.totalorder %v2050, 0
    %vm2125 = vcmp.lt.s32.totalorder %v2057, 0
    %vm2126 = vcmp.lt.s32.totalorder %v2064, 0
    %vm2127 = vcmp.lt.s32.totalorder %v2071, 0
    %vm2128 = vcmp.lt.s32.totalorder %v2078, 0
    %vm2129 = vcmp.lt.s32.totalorder %v2085, 0
    %vm2130 = vcmp.lt.s32.totalorder %v2092, 0
    %vm2131 = vcmp.lt.s32.totalorder %v2099, 0
    %vm2132 = vmand %vm2116, %vm2100
    %vm2133 = vmand %vm2117, %vm2101
    %vm2134 = vmand %vm2118, %vm2102
    %vm2135 = vmand %vm2119, %vm2103
    %vm2136 = vmand %vm2120, %vm2104
    %vm2137 = vmand %vm2121, %vm2105
    %vm2138 = vmand %vm2122, %vm2106
    %vm2139 = vmand %vm2123, %vm2107
    %vm2140 = vmand %vm2124, %vm2108
    %vm2141 = vmand %vm2125, %vm2109
    %vm2142 = vmand %vm2126, %vm2110
    %vm2143 = vmand %vm2127, %vm2111
    %vm2144 = vmand %vm2128, %vm2112
    %vm2145 = vmand %vm2129, %vm2113
    %vm2146 = vmand %vm2130, %vm2114
    %vm2147 = vmand %vm2131, %vm2115
    %v2148 = vadd.s32 %v1994, 4
    %v2149 = vadd.s32 %v2001, 4
    %v2150 = vadd.s32 %v2008, 4
    %v2151 = vadd.s32 %v2015, 4
    %v2152 = vadd.s32 %v2022, 4
    %v2153 = vadd.s32 %v2029, 4
    %v2154 = vadd.s32 %v2036, 4
    %v2155 = vadd.s32 %v2043, 4
    %v2156 = vadd.s32 %v2050, 4
    %v2157 = vadd.s32 %v2057, 4
    %v2158 = vadd.s32 %v2064, 4
    %v2159 = vadd.s32 %v2071, 4
    %v2160 = vadd.s32 %v2078, 4
    %v2161 = vadd.s32 %v2085, 4
    %v2162 = vadd.s32 %v2092, 4
    %v2163 = vadd.s32 %v2099, 4
    %v2164 = vsel %vm2132, %v2148, %v1994
    %v2165 = vsel %vm2133, %v2149, %v2001
    %v2166 = vsel %vm2134, %v2150, %v2008
    %v2167 = vsel %vm2135, %v2151, %v2015
    %v2168 = vsel %vm2136, %v2152, %v2022
    %v2169 = vsel %vm2137, %v2153, %v2029
    %v2170 = vsel %vm2138, %v2154, %v2036
    %v2171 = vsel %vm2139, %v2155, %v2043
    %v2172 = vsel %vm2140, %v2156, %v2050
    %v2173 = vsel %vm2141, %v2157, %v2057
    %v2174 = vsel %vm2142, %v2158, %v2064
    %v2175 = vsel %vm2143, %v2159, %v2071
    %v2176 = vsel %vm2144, %v2160, %v2078
    %v2177 = vsel %vm2145, %v2161, %v2085
    %v2178 = vsel %vm2146, %v2162, %v2092
    %v2179 = vsel %vm2147, %v2163, %v2099
    %vm2180 = vcmp.eq.s32.totalorder %v2164, %v1952
    %vm2181 = vcmp.eq.s32.totalorder %v2165, %v1952
    %vm2182 = vcmp.eq.s32.totalorder %v2166, %v1952
    %vm2183 = vcmp.eq.s32.totalorder %v2167, %v1952
    %vm2184 = vcmp.eq.s32.totalorder %v2168, %v1952
    %vm2185 = vcmp.eq.s32.totalorder %v2169, %v1952
    %vm2186 = vcmp.eq.s32.totalorder %v2170, %v1952
    %vm2187 = vcmp.eq.s32.totalorder %v2171, %v1952
    %vm2188 = vcmp.eq.s32.totalorder %v2172, %v1952
    %vm2189 = vcmp.eq.s32.totalorder %v2173, %v1952
    %vm2190 = vcmp.eq.s32.totalorder %v2174, %v1952
    %vm2191 = vcmp.eq.s32.totalorder %v2175, %v1952
    %vm2192 = vcmp.eq.s32.totalorder %v2176, %v1952
    %vm2193 = vcmp.eq.s32.totalorder %v2177, %v1952
    %vm2194 = vcmp.eq.s32.totalorder %v2178, %v1952
    %vm2195 = vcmp.eq.s32.totalorder %v2179, %v1952
    %vm2196 = vmand %vm2180, %vm1972
    %vm2197 = vmand %vm2181, %vm1973
    %vm2198 = vmand %vm2182, %vm1974
    %vm2199 = vmand %vm2183, %vm1975
    %vm2200 = vmand %vm2184, %vm1976
    %vm2201 = vmand %vm2185, %vm1977
    %vm2202 = vmand %vm2186, %vm1978
    %vm2203 = vmand %vm2187, %vm1979
    %vm2204 = vmand %vm2188, %vm1980
    %vm2205 = vmand %vm2189, %vm1981
    %vm2206 = vmand %vm2190, %vm1982
    %vm2207 = vmand %vm2191, %vm1983
    %vm2208 = vmand %vm2192, %vm1984
    %vm2209 = vmand %vm2193, %vm1985
    %vm2210 = vmand %vm2194, %vm1986
    %vm2211 = vmand %vm2195, %vm1987
    %v2212 = vsel %vm2196, 1.0, 0.0
    %v2213 = vsel %vm2197, 1.0, 0.0
    %v2214 = vsel %vm2198, 1.0, 0.0
    %v2215 = vsel %vm2199, 1.0, 0.0
    %v2216 = vsel %vm2200, 1.0, 0.0
    %v2217 = vsel %vm2201, 1.0, 0.0
    %v2218 = vsel %vm2202, 1.0, 0.0
    %v2219 = vsel %vm2203, 1.0, 0.0
    %v2220 = vsel %vm2204, 1.0, 0.0
    %v2221 = vsel %vm2205, 1.0, 0.0
    %v2222 = vsel %vm2206, 1.0, 0.0
    %v2223 = vsel %vm2207, 1.0, 0.0
    %v2224 = vsel %vm2208, 1.0, 0.0
    %v2225 = vsel %vm2209, 1.0, 0.0
    %v2226 = vsel %vm2210, 1.0, 0.0
    %v2227 = vsel %vm2211, 1.0, 0.0
    %v2228 = vld [vmem:[#allocation7] sm:$0xff]
    %2229 = vmatprep.subr.mxu0 0.0
    %2230 = vmatpush1.msra.mxu0 %v1678
    %2231 = vmatprep.subr.mxu0 0.0
    %2232 = vmatpush1.msra.mxu0 %v1679
    %2233 = vmatprep.subr.mxu0 0.0
    %2234 = vmatpush1.msra.mxu0 %v1680
    %2235 = vmatprep.subr.mxu0 0.0
    %2236 = vmatpush1.msra.mxu0 %v1681
    %2237 = vmatprep.subr.mxu0 0.0
    %2238 = vmatpush1.msra.mxu0 %v1682
    %2239 = vmatprep.subr.mxu0 0.0
    %2240 = vmatpush1.msra.mxu0 %v1683
    %2241 = vmatprep.subr.mxu0 0.0
    %2242 = vmatpush1.msra.mxu0 %v1684
    %2243 = vmatprep.subr.mxu0 0.0
    %2244 = vmatpush1.msra.mxu0 %v1685
    %2245 = vmatprep.subr.mxu0 0.0
    %2246 = vmatpush1.msra.mxu0 %v1686
    %2247 = vmatprep.subr.mxu0 0.0
    %2248 = vmatpush1.msra.mxu0 %v1687
    %2249 = vmatprep.subr.mxu0 0.0
    %2250 = vmatpush1.msra.mxu0 %v1688
    %2251 = vmatprep.subr.mxu0 0.0
    %2252 = vmatpush1.msra.mxu0 %v1689
    %2253 = vmatprep.subr.mxu0 0.0
    %2254 = vmatpush1.msra.mxu0 %v1690
    %2255 = vmatprep.subr.mxu0 0.0
    %2256 = vmatpush1.msra.mxu0 %v1691
    %2257 = vmatprep.subr.mxu0 0.0
    %2258 = vmatpush1.msra.mxu0 %v1692
    %2259 = vmatprep.subr.mxu0 0.0
    %2260 = vmatpush1.msra.mxu0 %v1693
    %2261 = vmatprep.subr.mxu0 0.0
    %2262 = vmatpush1.msra.mxu0 %v1694
    %2263 = vmatprep.subr.mxu0 0.0
    %2264 = vmatpush1.msra.mxu0 %v1695
    %2265 = vmatprep.subr.mxu0 0.0
    %2266 = vmatpush1.msra.mxu0 %v1696
    %2267 = vmatprep.subr.mxu0 0.0
    %2268 = vmatpush1.msra.mxu0 %v1697
    %2269 = vmatprep.subr.mxu0 0.0
    %2270 = vmatpush1.msra.mxu0 %v1698
    %2271 = vmatprep.subr.mxu0 0.0
    %2272 = vmatpush1.msra.mxu0 %v1699
    %2273 = vmatprep.subr.mxu0 0.0
    %2274 = vmatpush1.msra.mxu0 %v1700
    %2275 = vmatprep.subr.mxu0 0.0
    %2276 = vmatpush1.msra.mxu0 %v1701
    %2277 = vmatprep.subr.mxu0 0.0
    %2278 = vmatpush1.msra.mxu0 %v1702
    %2279 = vmatprep.subr.mxu0 0.0
    %2280 = vmatpush1.msra.mxu0 %v1703
    %2281 = vmatprep.subr.mxu0 0.0
    %2282 = vmatpush1.msra.mxu0 %v1704
    %2283 = vmatprep.subr.mxu0 0.0
    %2284 = vmatpush1.msra.mxu0 %v1705
    %2285 = vmatprep.subr.mxu0 0.0
    %2286 = vmatpush1.msra.mxu0 %v1706
    %2287 = vmatprep.subr.mxu0 0.0
    %2288 = vmatpush1.msra.mxu0 %v1707
    %2289 = vmatprep.subr.mxu0 0.0
    %2290 = vmatpush1.msra.mxu0 %v1708
    %2291 = vmatprep.subr.mxu0 0.0
    %2292 = vmatpush1.msra.mxu0 %v1709
    %2293 = vmatprep.mubr.f32.mxu0 %v2213
    %2294 = vmatmul.mubr.f32.gmra.mrb[0].mxu0 %v2212
    %v2295 = vpop.f32.mrb[0].mxu0
    %v2296 = vadd.f32 0.0, %v2295
    %v2297 = vpop.f32.mrb[0].mxu0
    %2298 = vdwg.mxu0
    %2299 = vmatprep.subr.mxu0 0.0
    %2300 = vmatpush1.msra.mxu0 %v1710
    %2301 = vmatprep.subr.mxu0 0.0
    %2302 = vmatpush1.msra.mxu0 %v1711
    %2303 = vmatprep.subr.mxu0 0.0
    %2304 = vmatpush1.msra.mxu0 %v1712
    %2305 = vmatprep.subr.mxu0 0.0
    %2306 = vmatpush1.msra.mxu0 %v1713
    %2307 = vmatprep.subr.mxu0 0.0
    %2308 = vmatpush1.msra.mxu0 %v1714
    %2309 = vmatprep.subr.mxu0 0.0
    %2310 = vmatpush1.msra.mxu0 %v1715
    %2311 = vmatprep.subr.mxu0 0.0
    %2312 = vmatpush1.msra.mxu0 %v1716
    %2313 = vmatprep.subr.mxu0 0.0
    %2314 = vmatpush1.msra.mxu0 %v1717
    %2315 = vmatprep.subr.mxu0 0.0
    %2316 = vmatpush1.msra.mxu0 %v1718
    %2317 = vmatprep.subr.mxu0 0.0
    %2318 = vmatpush1.msra.mxu0 %v1719
    %2319 = vmatprep.subr.mxu0 0.0
    %2320 = vmatpush1.msra.mxu0 %v1720
    %2321 = vmatprep.subr.mxu0 0.0
    %2322 = vmatpush1.msra.mxu0 %v1721
    %2323 = vmatprep.subr.mxu0 0.0
    %2324 = vmatpush1.msra.mxu0 %v1722
    %2325 = vmatprep.subr.mxu0 0.0
    %2326 = vmatpush1.msra.mxu0 %v1723
    %2327 = vmatprep.subr.mxu0 0.0
    %2328 = vmatpush1.msra.mxu0 %v1724
    %2329 = vmatprep.subr.mxu0 0.0
    %2330 = vmatpush1.msra.mxu0 %v1725
    %2331 = vmatprep.subr.mxu0 0.0
    %2332 = vmatpush1.msra.mxu0 %v1726
    %2333 = vmatprep.subr.mxu0 0.0
    %2334 = vmatpush1.msra.mxu0 %v1727
    %2335 = vmatprep.subr.mxu0 0.0
    %2336 = vmatpush1.msra.mxu0 %v1728
    %2337 = vmatprep.subr.mxu0 0.0
    %2338 = vmatpush1.msra.mxu0 %v1729
    %2339 = vmatprep.subr.mxu0 0.0
    %2340 = vmatpush1.msra.mxu0 %v1730
    %2341 = vmatprep.subr.mxu0 0.0
    %2342 = vmatpush1.msra.mxu0 %v1731
    %2343 = vmatprep.subr.mxu0 0.0
    %2344 = vmatpush1.msra.mxu0 %v1732
    %2345 = vmatprep.subr.mxu0 0.0
    %2346 = vmatpush1.msra.mxu0 %v1733
    %2347 = vmatprep.subr.mxu0 0.0
    %2348 = vmatpush1.msra.mxu0 %v1734
    %2349 = vmatprep.subr.mxu0 0.0
    %2350 = vmatpush1.msra.mxu0 %v1735
    %2351 = vmatprep.subr.mxu0 0.0
    %2352 = vmatpush1.msra.mxu0 %v1736
    %2353 = vmatprep.subr.mxu0 0.0
    %2354 = vmatpush1.msra.mxu0 %v1737
    %2355 = vmatprep.subr.mxu0 0.0
    %2356 = vmatpush1.msra.mxu0 %v1738
    %2357 = vmatprep.subr.mxu0 0.0
    %2358 = vmatpush1.msra.mxu0 %v1739
    %2359 = vmatprep.subr.mxu0 0.0
    %2360 = vmatpush1.msra.mxu0 %v1740
    %2361 = vmatprep.subr.mxu0 0.0
    %2362 = vmatpush1.msra.mxu0 %v1741
    %2363 = vmatprep.mubr.f32.mxu0 %v2215
    %2364 = vmatmul.mubr.f32.gmra.mrb[0].mxu0 %v2214
    %v2365 = vpop.f32.mrb[0].mxu0
    %v2366 = vadd.f32 %v2296, %v2365
    %v2367 = vpop.f32.mrb[0].mxu0
    %2368 = vdwg.mxu0
    %2369 = vmatprep.subr.mxu0 0.0
    %2370 = vmatpush1.msra.mxu0 %v1742
    %2371 = vmatprep.subr.mxu0 0.0
    %2372 = vmatpush1.msra.mxu0 %v1743
    %2373 = vmatprep.subr.mxu0 0.0
    %2374 = vmatpush1.msra.mxu0 %v1744
    %2375 = vmatprep.subr.mxu0 0.0
    %2376 = vmatpush1.msra.mxu0 %v1745
    %2377 = vmatprep.subr.mxu0 0.0
    %2378 = vmatpush1.msra.mxu0 %v1746
    %2379 = vmatprep.subr.mxu0 0.0
    %2380 = vmatpush1.msra.mxu0 %v1747
    %2381 = vmatprep.subr.mxu0 0.0
    %2382 = vmatpush1.msra.mxu0 %v1748
    %2383 = vmatprep.subr.mxu0 0.0
    %2384 = vmatpush1.msra.mxu0 %v1749
    %2385 = vmatprep.subr.mxu0 0.0
    %2386 = vmatpush1.msra.mxu0 %v1750
    %2387 = vmatprep.subr.mxu0 0.0
    %2388 = vmatpush1.msra.mxu0 %v1751
    %2389 = vmatprep.subr.mxu0 0.0
    %2390 = vmatpush1.msra.mxu0 %v1752
    %2391 = vmatprep.subr.mxu0 0.0
    %2392 = vmatpush1.msra.mxu0 %v1753
    %2393 = vmatprep.subr.mxu0 0.0
    %2394 = vmatpush1.msra.mxu0 %v1754
    %2395 = vmatprep.subr.mxu0 0.0
    %2396 = vmatpush1.msra.mxu0 %v1755
    %2397 = vmatprep.subr.mxu0 0.0
    %2398 = vmatpush1.msra.mxu0 %v1756
    %2399 = vmatprep.subr.mxu0 0.0
    %2400 = vmatpush1.msra.mxu0 %v1757
    %2401 = vmatprep.subr.mxu0 0.0
    %2402 = vmatpush1.msra.mxu0 %v1758
    %2403 = vmatprep.subr.mxu0 0.0
    %2404 = vmatpush1.msra.mxu0 %v1759
    %2405 = vmatprep.subr.mxu0 0.0
    %2406 = vmatpush1.msra.mxu0 %v1760
    %2407 = vmatprep.subr.mxu0 0.0
    %2408 = vmatpush1.msra.mxu0 %v1761
    %2409 = vmatprep.subr.mxu0 0.0
    %2410 = vmatpush1.msra.mxu0 %v1762
    %2411 = vmatprep.subr.mxu0 0.0
    %2412 = vmatpush1.msra.mxu0 %v1763
    %2413 = vmatprep.subr.mxu0 0.0
    %2414 = vmatpush1.msra.mxu0 %v1764
    %2415 = vmatprep.subr.mxu0 0.0
    %2416 = vmatpush1.msra.mxu0 %v1765
    %2417 = vmatprep.subr.mxu0 0.0
    %2418 = vmatpush1.msra.mxu0 %v1766
    %2419 = vmatprep.subr.mxu0 0.0
    %2420 = vmatpush1.msra.mxu0 %v1767
    %2421 = vmatprep.subr.mxu0 0.0
    %2422 = vmatpush1.msra.mxu0 %v1768
    %2423 = vmatprep.subr.mxu0 0.0
    %2424 = vmatpush1.msra.mxu0 %v1769
    %2425 = vmatprep.subr.mxu0 0.0
    %2426 = vmatpush1.msra.mxu0 %v1770
    %2427 = vmatprep.subr.mxu0 0.0
    %2428 = vmatpush1.msra.mxu0 %v1771
    %2429 = vmatprep.subr.mxu0 0.0
    %2430 = vmatpush1.msra.mxu0 %v1772
    %2431 = vmatprep.subr.mxu0 0.0
    %2432 = vmatpush1.msra.mxu0 %v1773
    %2433 = vmatprep.mubr.f32.mxu0 %v2217
    %2434 = vmatmul.mubr.f32.gmra.mrb[0].mxu0 %v2216
    %v2435 = vpop.f32.mrb[0].mxu0
    %v2436 = vadd.f32 %v2366, %v2435
    %v2437 = vpop.f32.mrb[0].mxu0
    %2438 = vdwg.mxu0
    %2439 = vmatprep.subr.mxu0 0.0
    %2440 = vmatpush1.msra.mxu0 %v1774
    %2441 = vmatprep.subr.mxu0 0.0
    %2442 = vmatpush1.msra.mxu0 %v1775
    %2443 = vmatprep.subr.mxu0 0.0
    %2444 = vmatpush1.msra.mxu0 %v1776
    %2445 = vmatprep.subr.mxu0 0.0
    %2446 = vmatpush1.msra.mxu0 %v1777
    %2447 = vmatprep.subr.mxu0 0.0
    %2448 = vmatpush1.msra.mxu0 %v1778
    %2449 = vmatprep.subr.mxu0 0.0
    %2450 = vmatpush1.msra.mxu0 %v1779
    %2451 = vmatprep.subr.mxu0 0.0
    %2452 = vmatpush1.msra.mxu0 %v1780
    %2453 = vmatprep.subr.mxu0 0.0
    %2454 = vmatpush1.msra.mxu0 %v1781
    %2455 = vmatprep.subr.mxu0 0.0
    %2456 = vmatpush1.msra.mxu0 %v1782
    %2457 = vmatprep.subr.mxu0 0.0
    %2458 = vmatpush1.msra.mxu0 %v1783
    %2459 = vmatprep.subr.mxu0 0.0
    %2460 = vmatpush1.msra.mxu0 %v1784
    %2461 = vmatprep.subr.mxu0 0.0
    %2462 = vmatpush1.msra.mxu0 %v1785
    %2463 = vmatprep.subr.mxu0 0.0
    %2464 = vmatpush1.msra.mxu0 %v1786
    %2465 = vmatprep.subr.mxu0 0.0
    %2466 = vmatpush1.msra.mxu0 %v1787
    %2467 = vmatprep.subr.mxu0 0.0
    %2468 = vmatpush1.msra.mxu0 %v1788
    %2469 = vmatprep.subr.mxu0 0.0
    %2470 = vmatpush1.msra.mxu0 %v1789
    %2471 = vmatprep.subr.mxu0 0.0
    %2472 = vmatpush1.msra.mxu0 %v1790
    %2473 = vmatprep.subr.mxu0 0.0
    %2474 = vmatpush1.msra.mxu0 %v1791
    %2475 = vmatprep.subr.mxu0 0.0
    %2476 = vmatpush1.msra.mxu0 %v1792
    %2477 = vmatprep.subr.mxu0 0.0
    %2478 = vmatpush1.msra.mxu0 %v1793
    %2479 = vmatprep.subr.mxu0 0.0
    %2480 = vmatpush1.msra.mxu0 %v1794
    %2481 = vmatprep.subr.mxu0 0.0
    %2482 = vmatpush1.msra.mxu0 %v1795
    %2483 = vmatprep.subr.mxu0 0.0
    %2484 = vmatpush1.msra.mxu0 %v1796
    %2485 = vmatprep.subr.mxu0 0.0
    %2486 = vmatpush1.msra.mxu0 %v1797
    %2487 = vmatprep.subr.mxu0 0.0
    %2488 = vmatpush1.msra.mxu0 %v1798
    %2489 = vmatprep.subr.mxu0 0.0
    %2490 = vmatpush1.msra.mxu0 %v1799
    %2491 = vmatprep.subr.mxu0 0.0
    %2492 = vmatpush1.msra.mxu0 %v1800
    %2493 = vmatprep.subr.mxu0 0.0
    %2494 = vmatpush1.msra.mxu0 %v1801
    %2495 = vmatprep.subr.mxu0 0.0
    %2496 = vmatpush1.msra.mxu0 %v1802
    %2497 = vmatprep.subr.mxu0 0.0
    %2498 = vmatpush1.msra.mxu0 %v1803
    %2499 = vmatprep.subr.mxu0 0.0
    %2500 = vmatpush1.msra.mxu0 %v1804
    %2501 = vmatprep.subr.mxu0 0.0
    %2502 = vmatpush1.msra.mxu0 %v1805
    %2503 = vmatprep.mubr.f32.mxu0 %v2219
    %2504 = vmatmul.mubr.f32.gmra.mrb[0].mxu0 %v2218
    %v2505 = vpop.f32.mrb[0].mxu0
    %v2506 = vadd.f32 %v2436, %v2505
    %v2507 = vpop.f32.mrb[0].mxu0
    %2508 = vdwg.mxu0
    %2509 = vmatprep.subr.mxu0 0.0
    %2510 = vmatpush1.msra.mxu0 %v1806
    %2511 = vmatprep.subr.mxu0 0.0
    %2512 = vmatpush1.msra.mxu0 %v1807
    %2513 = vmatprep.subr.mxu0 0.0
    %2514 = vmatpush1.msra.mxu0 %v1808
    %2515 = vmatprep.subr.mxu0 0.0
    %2516 = vmatpush1.msra.mxu0 %v1809
    %2517 = vmatprep.subr.mxu0 0.0
    %2518 = vmatpush1.msra.mxu0 %v1810
    %2519 = vmatprep.subr.mxu0 0.0
    %2520 = vmatpush1.msra.mxu0 %v1811
    %2521 = vmatprep.subr.mxu0 0.0
    %2522 = vmatpush1.msra.mxu0 %v1812
    %2523 = vmatprep.subr.mxu0 0.0
    %2524 = vmatpush1.msra.mxu0 %v1813
    %2525 = vmatprep.subr.mxu0 0.0
    %2526 = vmatpush1.msra.mxu0 %v1814
    %2527 = vmatprep.subr.mxu0 0.0
    %2528 = vmatpush1.msra.mxu0 %v1815
    %2529 = vmatprep.subr.mxu0 0.0
    %2530 = vmatpush1.msra.mxu0 %v1816
    %2531 = vmatprep.subr.mxu0 0.0
    %2532 = vmatpush1.msra.mxu0 %v1817
    %2533 = vmatprep.subr.mxu0 0.0
    %2534 = vmatpush1.msra.mxu0 %v1818
    %2535 = vmatprep.subr.mxu0 0.0
    %2536 = vmatpush1.msra.mxu0 %v1819
    %2537 = vmatprep.subr.mxu0 0.0
    %2538 = vmatpush1.msra.mxu0 %v1820
    %2539 = vmatprep.subr.mxu0 0.0
    %2540 = vmatpush1.msra.mxu0 %v1821
    %2541 = vmatprep.subr.mxu0 0.0
    %2542 = vmatpush1.msra.mxu0 %v1822
    %2543 = vmatprep.subr.mxu0 0.0
    %2544 = vmatpush1.msra.mxu0 %v1823
    %2545 = vmatprep.subr.mxu0 0.0
    %2546 = vmatpush1.msra.mxu0 %v1824
    %2547 = vmatprep.subr.mxu0 0.0
    %2548 = vmatpush1.msra.mxu0 %v1825
    %2549 = vmatprep.subr.mxu0 0.0
    %2550 = vmatpush1.msra.mxu0 %v1826
    %2551 = vmatprep.subr.mxu0 0.0
    %2552 = vmatpush1.msra.mxu0 %v1827
    %2553 = vmatprep.subr.mxu0 0.0
    %2554 = vmatpush1.msra.mxu0 %v1828
    %2555 = vmatprep.subr.mxu0 0.0
    %2556 = vmatpush1.msra.mxu0 %v1829
    %2557 = vmatprep.subr.mxu0 0.0
    %2558 = vmatpush1.msra.mxu0 %v1830
    %2559 = vmatprep.subr.mxu0 0.0
    %2560 = vmatpush1.msra.mxu0 %v1831
    %2561 = vmatprep.subr.mxu0 0.0
    %2562 = vmatpush1.msra.mxu0 %v1832
    %2563 = vmatprep.subr.mxu0 0.0
    %2564 = vmatpush1.msra.mxu0 %v1833
    %2565 = vmatprep.subr.mxu0 0.0
    %2566 = vmatpush1.msra.mxu0 %v1834
    %2567 = vmatprep.subr.mxu0 0.0
    %2568 = vmatpush1.msra.mxu0 %v1835
    %2569 = vmatprep.subr.mxu0 0.0
    %2570 = vmatpush1.msra.mxu0 %v1836
    %2571 = vmatprep.subr.mxu0 0.0
    %2572 = vmatpush1.msra.mxu0 %v1837
    %2573 = vmatprep.mubr.f32.mxu0 %v2221
    %2574 = vmatmul.mubr.f32.gmra.mrb[0].mxu0 %v2220
    %v2575 = vpop.f32.mrb[0].mxu0
    %v2576 = vadd.f32 %v2506, %v2575
    %v2577 = vpop.f32.mrb[0].mxu0
    %2578 = vdwg.mxu0
    %2579 = vmatprep.subr.mxu0 0.0
    %2580 = vmatpush1.msra.mxu0 %v1838
    %2581 = vmatprep.subr.mxu0 0.0
    %2582 = vmatpush1.msra.mxu0 %v1839
    %2583 = vmatprep.subr.mxu0 0.0
    %2584 = vmatpush1.msra.mxu0 %v1840
    %2585 = vmatprep.subr.mxu0 0.0
    %2586 = vmatpush1.msra.mxu0 %v1841
    %2587 = vmatprep.subr.mxu0 0.0
    %2588 = vmatpush1.msra.mxu0 %v1842
    %2589 = vmatprep.subr.mxu0 0.0
    %2590 = vmatpush1.msra.mxu0 %v1843
    %2591 = vmatprep.subr.mxu0 0.0
    %2592 = vmatpush1.msra.mxu0 %v1844
    %2593 = vmatprep.subr.mxu0 0.0
    %2594 = vmatpush1.msra.mxu0 %v1845
    %2595 = vmatprep.subr.mxu0 0.0
    %2596 = vmatpush1.msra.mxu0 %v1846
    %2597 = vmatprep.subr.mxu0 0.0
    %2598 = vmatpush1.msra.mxu0 %v1847
    %2599 = vmatprep.subr.mxu0 0.0
    %2600 = vmatpush1.msra.mxu0 %v1848
    %2601 = vmatprep.subr.mxu0 0.0
    %2602 = vmatpush1.msra.mxu0 %v1849
    %2603 = vmatprep.subr.mxu0 0.0
    %2604 = vmatpush1.msra.mxu0 %v1850
    %2605 = vmatprep.subr.mxu0 0.0
    %2606 = vmatpush1.msra.mxu0 %v1851
    %2607 = vmatprep.subr.mxu0 0.0
    %2608 = vmatpush1.msra.mxu0 %v1852
    %2609 = vmatprep.subr.mxu0 0.0
    %2610 = vmatpush1.msra.mxu0 %v1853
    %2611 = vmatprep.subr.mxu0 0.0
    %2612 = vmatpush1.msra.mxu0 %v1854
    %2613 = vmatprep.subr.mxu0 0.0
    %2614 = vmatpush1.msra.mxu0 %v1855
    %2615 = vmatprep.subr.mxu0 0.0
    %2616 = vmatpush1.msra.mxu0 %v1856
    %2617 = vmatprep.subr.mxu0 0.0
    %2618 = vmatpush1.msra.mxu0 %v1857
    %2619 = vmatprep.subr.mxu0 0.0
    %2620 = vmatpush1.msra.mxu0 %v1858
    %2621 = vmatprep.subr.mxu0 0.0
    %2622 = vmatpush1.msra.mxu0 %v1859
    %2623 = vmatprep.subr.mxu0 0.0
    %2624 = vmatpush1.msra.mxu0 %v1860
    %2625 = vmatprep.subr.mxu0 0.0
    %2626 = vmatpush1.msra.mxu0 %v1861
    %2627 = vmatprep.subr.mxu0 0.0
    %2628 = vmatpush1.msra.mxu0 %v1862
    %2629 = vmatprep.subr.mxu0 0.0
    %2630 = vmatpush1.msra.mxu0 %v1863
    %2631 = vmatprep.subr.mxu0 0.0
    %2632 = vmatpush1.msra.mxu0 %v1864
    %2633 = vmatprep.subr.mxu0 0.0
    %2634 = vmatpush1.msra.mxu0 %v1865
    %2635 = vmatprep.subr.mxu0 0.0
    %2636 = vmatpush1.msra.mxu0 %v1866
    %2637 = vmatprep.subr.mxu0 0.0
    %2638 = vmatpush1.msra.mxu0 %v1867
    %2639 = vmatprep.subr.mxu0 0.0
    %2640 = vmatpush1.msra.mxu0 %v1868
    %2641 = vmatprep.subr.mxu0 0.0
    %2642 = vmatpush1.msra.mxu0 %v1869
    %2643 = vmatprep.mubr.f32.mxu0 %v2223
    %2644 = vmatmul.mubr.f32.gmra.mrb[0].mxu0 %v2222
    %v2645 = vpop.f32.mrb[0].mxu0
    %v2646 = vadd.f32 %v2576, %v2645
    %v2647 = vpop.f32.mrb[0].mxu0
    %2648 = vdwg.mxu0
    %2649 = vmatprep.subr.mxu0 0.0
    %2650 = vmatpush1.msra.mxu0 %v1870
    %2651 = vmatprep.subr.mxu0 0.0
    %2652 = vmatpush1.msra.mxu0 %v1871
    %2653 = vmatprep.subr.mxu0 0.0
    %2654 = vmatpush1.msra.mxu0 %v1872
    %2655 = vmatprep.subr.mxu0 0.0
    %2656 = vmatpush1.msra.mxu0 %v1873
    %2657 = vmatprep.subr.mxu0 0.0
    %2658 = vmatpush1.msra.mxu0 %v1874
    %2659 = vmatprep.subr.mxu0 0.0
    %2660 = vmatpush1.msra.mxu0 %v1875
    %2661 = vmatprep.subr.mxu0 0.0
    %2662 = vmatpush1.msra.mxu0 %v1876
    %2663 = vmatprep.subr.mxu0 0.0
    %2664 = vmatpush1.msra.mxu0 %v1877
    %2665 = vmatprep.subr.mxu0 0.0
    %2666 = vmatpush1.msra.mxu0 %v1878
    %2667 = vmatprep.subr.mxu0 0.0
    %2668 = vmatpush1.msra.mxu0 %v1879
    %2669 = vmatprep.subr.mxu0 0.0
    %2670 = vmatpush1.msra.mxu0 %v1880
    %2671 = vmatprep.subr.mxu0 0.0
    %2672 = vmatpush1.msra.mxu0 %v1881
    %2673 = vmatprep.subr.mxu0 0.0
    %2674 = vmatpush1.msra.mxu0 %v1882
    %2675 = vmatprep.subr.mxu0 0.0
    %2676 = vmatpush1.msra.mxu0 %v1883
    %2677 = vmatprep.subr.mxu0 0.0
    %2678 = vmatpush1.msra.mxu0 %v1884
    %2679 = vmatprep.subr.mxu0 0.0
    %2680 = vmatpush1.msra.mxu0 %v1885
    %2681 = vmatprep.subr.mxu0 0.0
    %2682 = vmatpush1.msra.mxu0 %v1886
    %2683 = vmatprep.subr.mxu0 0.0
    %2684 = vmatpush1.msra.mxu0 %v1887
    %2685 = vmatprep.subr.mxu0 0.0
    %2686 = vmatpush1.msra.mxu0 %v1888
    %2687 = vmatprep.subr.mxu0 0.0
    %2688 = vmatpush1.msra.mxu0 %v1889
    %2689 = vmatprep.subr.mxu0 0.0
    %2690 = vmatpush1.msra.mxu0 %v1890
    %2691 = vmatprep.subr.mxu0 0.0
    %2692 = vmatpush1.msra.mxu0 %v1891
    %2693 = vmatprep.subr.mxu0 0.0
    %2694 = vmatpush1.msra.mxu0 %v1892
    %2695 = vmatprep.subr.mxu0 0.0
    %2696 = vmatpush1.msra.mxu0 %v1893
    %2697 = vmatprep.subr.mxu0 0.0
    %2698 = vmatpush1.msra.mxu0 %v1894
    %2699 = vmatprep.subr.mxu0 0.0
    %2700 = vmatpush1.msra.mxu0 %v1895
    %2701 = vmatprep.subr.mxu0 0.0
    %2702 = vmatpush1.msra.mxu0 %v1896
    %2703 = vmatprep.subr.mxu0 0.0
    %2704 = vmatpush1.msra.mxu0 %v1897
    %2705 = vmatprep.subr.mxu0 0.0
    %2706 = vmatpush1.msra.mxu0 %v1898
    %2707 = vmatprep.subr.mxu0 0.0
    %2708 = vmatpush1.msra.mxu0 %v1899
    %2709 = vmatprep.subr.mxu0 0.0
    %2710 = vmatpush1.msra.mxu0 %v1900
    %2711 = vmatprep.subr.mxu0 0.0
    %2712 = vmatpush1.msra.mxu0 %v1901
    %2713 = vmatprep.mubr.f32.mxu0 %v2225
    %2714 = vmatmul.mubr.f32.gmra.mrb[0].mxu0 %v2224
    %v2715 = vpop.f32.mrb[0].mxu0
    %v2716 = vadd.f32 %v2646, %v2715
    %v2717 = vpop.f32.mrb[0].mxu0
    %2718 = vdwg.mxu0
    %2719 = vmatprep.subr.mxu0 0.0
    %2720 = vmatpush1.msra.mxu0 %v1902
    %2721 = vmatprep.subr.mxu0 0.0
    %2722 = vmatpush1.msra.mxu0 %v1903
    %2723 = vmatprep.subr.mxu0 0.0
    %2724 = vmatpush1.msra.mxu0 %v1904
    %2725 = vmatprep.subr.mxu0 0.0
    %2726 = vmatpush1.msra.mxu0 %v1905
    %2727 = vmatprep.subr.mxu0 0.0
    %2728 = vmatpush1.msra.mxu0 %v1906
    %2729 = vmatprep.subr.mxu0 0.0
    %2730 = vmatpush1.msra.mxu0 %v1907
    %2731 = vmatprep.subr.mxu0 0.0
    %2732 = vmatpush1.msra.mxu0 %v1908
    %2733 = vmatprep.subr.mxu0 0.0
    %2734 = vmatpush1.msra.mxu0 %v1909
    %2735 = vmatprep.subr.mxu0 0.0
    %2736 = vmatpush1.msra.mxu0 %v1910
    %2737 = vmatprep.subr.mxu0 0.0
    %2738 = vmatpush1.msra.mxu0 %v1911
    %2739 = vmatprep.subr.mxu0 0.0
    %2740 = vmatpush1.msra.mxu0 %v1912
    %2741 = vmatprep.subr.mxu0 0.0
    %2742 = vmatpush1.msra.mxu0 %v1913
    %2743 = vmatprep.subr.mxu0 0.0
    %2744 = vmatpush1.msra.mxu0 %v1914
    %2745 = vmatprep.subr.mxu0 0.0
    %2746 = vmatpush1.msra.mxu0 %v1915
    %2747 = vmatprep.subr.mxu0 0.0
    %2748 = vmatpush1.msra.mxu0 %v1916
    %2749 = vmatprep.subr.mxu0 0.0
    %2750 = vmatpush1.msra.mxu0 %v1917
    %2751 = vmatprep.subr.mxu0 0.0
    %2752 = vmatpush1.msra.mxu0 %v1918
    %2753 = vmatprep.subr.mxu0 0.0
    %2754 = vmatpush1.msra.mxu0 %v1919
    %2755 = vmatprep.subr.mxu0 0.0
    %2756 = vmatpush1.msra.mxu0 %v1920
    %2757 = vmatprep.subr.mxu0 0.0
    %2758 = vmatpush1.msra.mxu0 %v1921
    %2759 = vmatprep.subr.mxu0 0.0
    %2760 = vmatpush1.msra.mxu0 %v1922
    %2761 = vmatprep.subr.mxu0 0.0
    %2762 = vmatpush1.msra.mxu0 %v1923
    %2763 = vmatprep.subr.mxu0 0.0
    %2764 = vmatpush1.msra.mxu0 %v1924
    %2765 = vmatprep.subr.mxu0 0.0
    %2766 = vmatpush1.msra.mxu0 %v1925
    %2767 = vmatprep.subr.mxu0 0.0
    %2768 = vmatpush1.msra.mxu0 %v1926
    %2769 = vmatprep.subr.mxu0 0.0
    %2770 = vmatpush1.msra.mxu0 %v1927
    %2771 = vmatprep.subr.mxu0 0.0
    %2772 = vmatpush1.msra.mxu0 %v1928
    %2773 = vmatprep.subr.mxu0 0.0
    %2774 = vmatpush1.msra.mxu0 %v1929
    %2775 = vmatprep.subr.mxu0 0.0
    %2776 = vmatpush1.msra.mxu0 %v1930
    %2777 = vmatprep.subr.mxu0 0.0
    %2778 = vmatpush1.msra.mxu0 %v1931
    %2779 = vmatprep.subr.mxu0 0.0
    %2780 = vmatpush1.msra.mxu0 %v1932
    %2781 = vmatprep.subr.mxu0 0.0
    %2782 = vmatpush1.msra.mxu0 %v1933
    %2783 = vmatprep.mubr.f32.mxu0 %v2227
    %2784 = vmatmul.mubr.f32.gmra.mrb[0].mxu0 %v2226
    %v2785 = vpop.f32.mrb[0].mxu0
    %v2786 = vadd.f32 %v2716, %v2785
    %v2787 = vpop.f32.mrb[0].mxu0
    %2788 = vdwg.mxu0
    %v2789 = vadd.f32 %v2228, %v2786
    %2790 = vst [vmem:[#allocation7] sm:$0xff] %v2789
    // Predicated region
    $region26: #{tpu_custom_call.1} parent=1 // pred_check
      _
    $region27: #{tpu_custom_call.1} parent=1 // pred_check_branch
      %2792 = sbr.rel (0) target = $region29
    $region28: #{tpu_custom_call.1} parent=1 // pred_region
      %s2794 = ssub.s32 128, 128
      %2795 = vsyncadd [#allocation4], %s2794
      %s2797 = sshll.u32 [#allocation7], 4
      %s2798 = int_to_ptr.vmem [resolvable:$true] %s2797
      %2800 = dma.vmem_to_hbm [thread:$0]  %s2798, 128, %s3, [#allocation4]
    $region29: #{tpu_custom_call.1} parent=1 // pred_fallthru
      _
    // Predicated region
    $region30: #{tpu_custom_call.1} parent=1 // pred_check
      _
    $region31: #{tpu_custom_call.1} parent=1 // pred_check_branch
      %2802 = sbr.rel (0) target = $region33
    $region32: #{tpu_custom_call.1} parent=1 // pred_region
      %2803 = dma.done [#allocation4], 128
    $region33: #{tpu_custom_call.1} parent=1 // pred_fallthru
      _
    %2804 = vsyncpa [#allocation3], 1
    %2805 = vsyncpa [#allocation6], 1
    %2806 = vsyncpa [#allocation4], 1

</llo_original>
